<compile_context>
chip_gen: v7x
topology: tpu7x:2x2x1
jax: 0.10.0
libtpu: 0.0.40
codegen_flags: <defaults>
</compile_context>

<pallas_src>
import jax
import jax.numpy as jnp
import numpy as np
from jax.experimental import pallas as pl
from jax.experimental.pallas import tpu as pltpu


def _round_up(x, m):
    return ((x + m - 1) // m) * m


# ----------------------------------------------------------------------------
# Pallas kernel: one grid step == TC LSTM timesteps for one batch block.
# ----------------------------------------------------------------------------
def _make_lstm_kernel(TC, H, T_valid, n_chunks):
    # Number of valid steps in the (possibly padded) last time chunk; 0 => no padding.
    rem = T_valid % TC

    def kernel(
        xproj_ref,  # (TC, BB, 4H) bf16  precomputed input projections (+ combined bias)
        whc_ref,    # (4H, 4H)     bf16  block-diagonal hidden->hidden weight (resident)
        zhc_ref,    # (BB, 4H)     f32   lane-packed hidden dropout masks (resident)
        hn_ref,     # (1, BB, TC*H)      output: lane-dense packed hidden states
        hT_ref,     # (BB, H)            output: final hidden state (resident)
        cT_ref,     # (BB, H)            output: final cell state (resident)
        h4_sc,      # (BB, 4H) f32 VMEM scratch: lane-replicated h, persists across chunks
        c_sc,       # (BB, H)  f32 VMEM scratch: c, persists across chunks
    ):
        chunk = pl.program_id(1)

        @pl.when(chunk == 0)
        def _():
            h4_sc[...] = jnp.zeros_like(h4_sc)
            c_sc[...] = jnp.zeros_like(c_sc)

        whc = whc_ref[...]          # hoisted: loaded once per chunk (bf16)
        zhc = zhc_ref[...]          # hoisted: loaded once per chunk (f32)
        BB = zhc.shape[0]
        zeros3 = jnp.zeros((BB, 3 * H), jnp.float32)      # loop-invariant constant

        # Scalar predicate used only for the trailing padded steps of the last chunk.
        not_last_chunk = chunk != (n_chunks - 1)

        h4 = h4_sc[...]             # lane-replicated carry [h|h|h|h]
        c = c_sc[...]

        # Static Python unroll: arrays are tiny ((BB,128)-ish) so live ranges are fine,
        # and static t gives static lane offsets for the packed hn store below.
        for t in range(TC):
            # One fused MXU pass (bf16 operands, f32 accumulate): block-diag weight
            # => per-gate (h * zh[g]) @ Uh[g].
            hz = (h4 * zhc).astype(jnp.bfloat16)
            pre = xproj_ref[t].astype(jnp.float32) + jnp.dot(
                hz, whc, preferred_element_type=jnp.float32)

            # Full-width nonlinearities (2 EUP pushes/step), gates sliced afterwards.
            sig = jax.nn.sigmoid(pre)
            th = jnp.tanh(pre)
            i_g = sig[:, 0 * H:1 * H]
            f_g = sig[:, 1 * H:2 * H]
            o_g = sig[:, 2 * H:3 * H]
            g_g = th[:, 3 * H:4 * H]

            c_new = f_g * c + i_g * g_g
            h_new = o_g * jnp.tanh(c_new)

            # Lane-replicate h_new into the 4 gate blocks with a log2 roll chain (XLU).
            h_pad = jnp.concatenate([h_new, zeros3], axis=-1)        # [h|0|0|0]
            h2 = h_pad + pltpu.roll(h_pad, shift=H, axis=1)          # [h|h|0|0]
            h4_new = h2 + pltpu.roll(h2, shift=2 * H, axis=1)        # [h|h|h|h]

            # Trailing padded timesteps (only possible in the last chunk): keep carries.
            if rem != 0 and t >= rem:
                c_new = jnp.where(not_last_chunk, c_new, c)
                h4_new = jnp.where(not_last_chunk, h4_new, h4)

            # Lane-dense packed store (static lane offset); unpacked in the wrapper.
            hn_ref[0, :, t * H:(t + 1) * H] = h_new.astype(hn_ref.dtype)

            h4, c = h4_new, c_new

        h4_sc[...] = h4
        c_sc[...] = c

        # NOTE: hT/cT have constant-over-chunk index maps; their buffers are flushed
        # only after the last chunk of this batch block, so writing them solely on the
        # last chunk is safe.  Keep that invariant if the BlockSpecs ever change.
        @pl.when(chunk == n_chunks - 1)
        def _():
            hT_ref[...] = h4[:, 0:H].astype(hT_ref.dtype)
            cT_ref[...] = c.astype(cT_ref.dtype)

    return kernel


# ----------------------------------------------------------------------------
# Wrapper: hoisted projections, padding, block-diag weight, pallas_call.
# ----------------------------------------------------------------------------
def stochastic_lstm_forward(x, wx, bx, wh, bh, zx, zh, *, time_chunk=16):
    """x: (T, B, I); returns hn (T, B, H), (h_T, c_T) each (B, H). hx=None semantics."""
    T, B, I = x.shape
    H = wx.shape[-1]
    dtype = x.dtype
    assert T >= 1, "StochasticLSTMCell forward requires at least one timestep"

    # --- pad batch to a multiple of 8 sublanes / per-core batch block --------------
    Bp = _round_up(B, 8)
    BB = Bp if Bp <= 128 else 128          # per-grid-step batch block (per core on v7x)
    Bp = _round_up(Bp, BB)
    pad_b = Bp - B
    if pad_b:
        x = jnp.pad(x, ((0, 0), (0, pad_b), (0, 0)))
        zx = jnp.pad(zx, ((0, 0), (0, pad_b), (0, 0)))
        zh = jnp.pad(zh, ((0, 0), (0, pad_b), (0, 0)))

    # --- hoist the input projections out of the recurrence (one big MXU pass) ------
    b_comb = bx + bh                                              # (4, 1, H)
    xz = x[:, None, :, :] * zx[None]                              # (T, 4, Bp, I)
    xproj = jnp.einsum("tgbi,gih->tbgh", xz, wx,
                       preferred_element_type=jnp.float32)        # (T, Bp, 4, H)
    xproj = (xproj + jnp.transpose(b_comb, (1, 0, 2))).reshape(T, Bp, 4 * H)
    # Stream the dominant (T, Bp, 4H) operand in bf16: halves HBM traffic and the
    # double-buffered VMEM footprint (matters first on v7x's 64 MiB VMEM).
    xproj = xproj.astype(jnp.bfloat16)

    # --- pad the time axis so the chunk size never collapses for awkward T ---------
    TC = time_chunk
    Tp = _round_up(T, TC)
    if Tp != T:
        xproj = jnp.pad(xproj, ((0, Tp - T), (0, 0), (0, 0)))
    n_chunks = Tp // TC
    nb = Bp // BB

    # --- block-diagonal hidden weight (bf16) and lane-packed hidden masks ----------
    # TODO(synk): for H >= 64 switch to per-gate matmuls instead of the zero-padded
    # block-diagonal weight (it wastes 75% of MXU MACs once throughput binds).
    rows = []
    for g in range(4):
        row = [wh[g] if gg == g else jnp.zeros((H, H), wh.dtype) for gg in range(4)]
        rows.append(jnp.concatenate(row, axis=1))
    whc = jnp.concatenate(rows, axis=0).astype(jnp.bfloat16)      # (4H, 4H)
    zhc = jnp.transpose(zh, (1, 0, 2)).reshape(Bp, 4 * H).astype(jnp.float32)

    # NOTE: at realistic sizes, budget VMEM explicitly (vmem_limit_bytes) for the v7x
    # 64 MiB ceiling; unnecessary at these sizes, so defaults are kept for robustness.
    kernel = pl.pallas_call(
        _make_lstm_kernel(TC, H, T, n_chunks),
        out_shape=(
            jax.ShapeDtypeStruct((n_chunks, Bp, TC * H), dtype),   # lane-dense hn
            jax.ShapeDtypeStruct((Bp, H), dtype),                  # h_T
            jax.ShapeDtypeStruct((Bp, H), dtype),                  # c_T
        ),
        grid_spec=pltpu.PrefetchScalarGridSpec(
            num_scalar_prefetch=0,
            grid=(nb, n_chunks),                                   # (batch blocks, time chunks)
            in_specs=[
                pl.BlockSpec((TC, BB, 4 * H), lambda b, c: (c, b, 0)),   # xproj chunk
                pl.BlockSpec((4 * H, 4 * H), lambda b, c: (0, 0)),       # whc (resident)
                pl.BlockSpec((BB, 4 * H), lambda b, c: (b, 0)),          # zhc (resident)
            ],
            out_specs=[
                pl.BlockSpec((1, BB, TC * H), lambda b, c: (c, b, 0)),   # packed hn chunk
                pl.BlockSpec((BB, H), lambda b, c: (b, 0)),              # h_T (resident)
                pl.BlockSpec((BB, H), lambda b, c: (b, 0)),              # c_T (resident)
            ],
            scratch_shapes=[
                pltpu.VMEM((BB, 4 * H), jnp.float32),   # lane-replicated h state
                pltpu.VMEM((BB, H), jnp.float32),       # c state
            ],
        ),
        compiler_params=pltpu.CompilerParams(
            # batch blocks are independent (megacore on v7x); time is the recurrence.
            dimension_semantics=("parallel", "arbitrary"),
        ),
    )
    hn_packed, h_t, c_t = kernel(xproj, whc, zhc)

    # Unpack the lane-dense hn: (n_chunks, Bp, TC*H) -> (Tp, Bp, H) -> slice.
    hn = hn_packed.reshape(n_chunks, Bp, TC, H)
    hn = jnp.transpose(hn, (0, 2, 1, 3)).reshape(Tp, Bp, H)
    return hn[:T, :B], (h_t[:B], c_t[:B])


# ----------------------------------------------------------------------------
# Glue: parameter init + concrete-dropout mask sampling (matches _sample_mask)
# ----------------------------------------------------------------------------
def init_params(key, input_size, hidden_size):
    k = 1.0 / jnp.sqrt(jnp.asarray(hidden_size, jnp.float32))
    keys = jax.random.split(key, 17)
    # PyTorch Linear weight is (out, in); we store transposed (in, out).
    wx = jnp.stack([
        jax.random.uniform(keys[i], (input_size, hidden_size), jnp.float32, -k, k)
        for i in range(4)
    ])                                              # (4, I, H)  order: i,f,o,g
    bx = jnp.stack([
        jax.random.uniform(keys[4 + i], (1, hidden_size), jnp.float32, -k, k)
        for i in range(4)
    ])                                              # (4, 1, H)
    wh = jnp.stack([
        jax.random.uniform(keys[8 + i], (hidden_size, hidden_size), jnp.float32, -k, k)
        for i in range(4)
    ])                                              # (4, H, H)
    bh = jnp.stack([
        jax.random.uniform(keys[12 + i], (1, hidden_size), jnp.float32, -k, k)
        for i in range(4)
    ])                                              # (4, 1, H)
    p_logit = jax.random.normal(keys[16], (1,), jnp.float32)  # dropout=None path
    return wx, bx, wh, bh, p_logit


def sample_mask(key, p_logit, batch, input_size, hidden_size):
    """Concrete-dropout masks, mirroring StochasticLSTMCell._sample_mask."""
    p = jax.nn.sigmoid(p_logit)                     # (1,)
    eps = jnp.float32(1e-7)
    temp = jnp.float32(0.1)
    GATES = 4
    kx, kh = jax.random.split(key)
    ux = jax.random.uniform(kx, (GATES, batch, input_size), jnp.float32)
    uh = jax.random.uniform(kh, (GATES, batch, hidden_size), jnp.float32)

    def z(u):
        return (1.0 - jax.nn.sigmoid(
            (jnp.log(p + eps) - jnp.log(1.0 - p + eps)
             + jnp.log(u + eps) - jnp.log(1.0 - u + eps)) / temp
        )) / (1.0 - p)

    if input_size == 1:
        zx = 1.0 - jax.nn.sigmoid(
            (jnp.log(eps) - jnp.log(1.0 + eps)
             + jnp.log(ux + eps) - jnp.log(1.0 - ux + eps)) / temp
        )
    else:
        zx = z(ux)
    zh = z(uh)
    return zx, zh


# ----------------------------------------------------------------------------
# Pure-JAX reference (unfused, mirrors the PyTorch loop) for correctness check
# ----------------------------------------------------------------------------
def reference_forward(x, wx, bx, wh, bh, zx, zh):
    T, B, I = x.shape
    H = wx.shape[-1]
    h = jnp.zeros((B, H), x.dtype)
    c = jnp.zeros((B, H), x.dtype)
    hn = []
    for t in range(T):
        pre = [
            (x[t] * zx[g]) @ wx[g] + bx[g] + (h * zh[g]) @ wh[g] + bh[g]
            for g in range(4)
        ]
        i = jax.nn.sigmoid(pre[0])
        f = jax.nn.sigmoid(pre[1])
        o = jax.nn.sigmoid(pre[2])
        g_ = jnp.tanh(pre[3])
        c = f * c + i * g_
        h = o * jnp.tanh(c)
        hn.append(h)
    return jnp.stack(hn), (h, c)


if __name__ == "__main__":
    T, B, I, H = 8, 2, 16, 32

    root = jax.random.PRNGKey(0)
    k_param, k_mask, k_x = jax.random.split(root, 3)

    wx, bx, wh, bh, p_logit = init_params(k_param, I, H)
    zx, zh = sample_mask(k_mask, p_logit, B, I, H)
    x = jax.random.normal(k_x, (T, B, I), jnp.float32)

    hn, (h_t, c_t) = stochastic_lstm_forward(x, wx, bx, wh, bh, zx, zh)
    jax.block_until_ready((hn, h_t, c_t))

    # bf16 MXU operands (hz/whc/xproj) lose ~8 mantissa bits on the preactivations;
    # tolerances loosened accordingly (f32 reference).
    hn_ref, (h_ref, c_ref) = reference_forward(x, wx, bx, wh, bh, zx, zh)
    np.testing.assert_allclose(np.asarray(hn), np.asarray(hn_ref), rtol=5e-2, atol=5e-2)
    np.testing.assert_allclose(np.asarray(h_t), np.asarray(h_ref), rtol=5e-2, atol=5e-2)
    np.testing.assert_allclose(np.asarray(c_t), np.asarray(c_ref), rtol=5e-2, atol=5e-2)

    print("KERNEL_OK")
</pallas_src>

<mosaic_0001>
module attributes {stable_mosaic.version = 11 : i64} {
  func.func @kernel(%arg0: i32, %arg1: i32, %arg2: memref<16x8x128xbf16, #tpu.memory_space<vmem>>, %arg3: memref<128x128xbf16, #tpu.memory_space<vmem>>, %arg4: memref<8x128xf32, #tpu.memory_space<vmem>>, %arg5: memref<1x8x512xf32, #tpu.memory_space<vmem>>, %arg6: memref<8x32xf32, #tpu.memory_space<vmem>>, %arg7: memref<8x32xf32, #tpu.memory_space<vmem>>, %arg8: memref<8x128xf32, #tpu.memory_space<vmem>>, %arg9: memref<8x32xf32, #tpu.memory_space<vmem>>) attributes {dimension_semantics = [#tpu.dimension_semantics<parallel>, #tpu.dimension_semantics<arbitrary>], iteration_bounds = array<i64: 1, 1>, scalar_prefetch = 0 : i64, scratch_operands = 2 : i64, tpu.core_type = #tpu.core_type<tc>, window_params = [{transform_indices = @transform_0, window_bounds = array<i64: 16, 8, 128>}, {pipeline_mode = #tpu.pipeline_mode<synchronous>, transform_indices = @transform_1, window_bounds = array<i64: 128, 128>}, {transform_indices = @transform_2, window_bounds = array<i64: 8, 128>}, {transform_indices = @transform_3, window_bounds = array<i64: 1, 8, 512>}, {transform_indices = @transform_4, window_bounds = array<i64: 8, 32>}, {transform_indices = @transform_5, window_bounds = array<i64: 8, 32>}]} {
    %c0_i32 = arith.constant 0 : i32
    %0 = arith.cmpi eq, %arg1, %c0_i32 : i32
    %1 = arith.extui %0 : i1 to i32
    %c0_i32_0 = arith.constant 0 : i32
    %2 = arith.cmpi ne, %1, %c0_i32_0 : i32
    scf.if %2 {
      %cst_143 = arith.constant 0.000000e+00 : f32
      %510 = vector.broadcast %cst_143 : f32 to vector<8x128xf32>
      %c0_144 = arith.constant 0 : index
      %c0_145 = arith.constant 0 : index
      %511 = vector.load %arg8[%c0_144, %c0_145] : memref<8x128xf32, #tpu.memory_space<vmem>>, vector<8x128xf32>
      tpu.vector_store %arg8[%c0_144, %c0_145], %510 {strides = array<i32>} : memref<8x128xf32, #tpu.memory_space<vmem>>, vector<8x128xf32>,
      %cst_146 = arith.constant 0.000000e+00 : f32
      %512 = vector.broadcast %cst_146 : f32 to vector<8x32xf32>
      %c0_147 = arith.constant 0 : index
      %c0_148 = arith.constant 0 : index
      %513 = vector.load %arg9[%c0_147, %c0_148] : memref<8x32xf32, #tpu.memory_space<vmem>>, vector<8x32xf32>
      tpu.vector_store %arg9[%c0_147, %c0_148], %512 {strides = array<i32>} : memref<8x32xf32, #tpu.memory_space<vmem>>, vector<8x32xf32>,
    } else {
    }
    %c0 = arith.constant 0 : index
    %c0_1 = arith.constant 0 : index
    %3 = vector.load %arg3[%c0, %c0_1] : memref<128x128xbf16, #tpu.memory_space<vmem>>, vector<128x128xbf16>
    %c0_2 = arith.constant 0 : index
    %c0_3 = arith.constant 0 : index
    %4 = vector.load %arg4[%c0_2, %c0_3] : memref<8x128xf32, #tpu.memory_space<vmem>>, vector<8x128xf32>
    %cst = arith.constant 0.000000e+00 : f32
    %5 = vector.broadcast %cst : f32 to vector<8x96xf32>
    %c0_i32_4 = arith.constant 0 : i32
    %6 = arith.cmpi ne, %arg1, %c0_i32_4 : i32
    %c0_5 = arith.constant 0 : index
    %c0_6 = arith.constant 0 : index
    %7 = vector.load %arg8[%c0_5, %c0_6] : memref<8x128xf32, #tpu.memory_space<vmem>>, vector<8x128xf32>
    %c0_7 = arith.constant 0 : index
    %c0_8 = arith.constant 0 : index
    %8 = vector.load %arg9[%c0_7, %c0_8] : memref<8x32xf32, #tpu.memory_space<vmem>>, vector<8x32xf32>
    %9 = arith.mulf %7, %4 : vector<8x128xf32>
    %10 = arith.truncf %9 : vector<8x128xf32> to vector<8x128xbf16>
    %c0_9 = arith.constant 0 : index
    %c0_10 = arith.constant 0 : index
    %c0_11 = arith.constant 0 : index
    %11 = vector.load %arg2[%c0_9, %c0_10, %c0_11] : memref<16x8x128xbf16, #tpu.memory_space<vmem>>, vector<1x8x128xbf16>
    %12 = vector.shape_cast %11 : vector<1x8x128xbf16> to vector<8x128xbf16>
    %13 = arith.extf %12 : vector<8x128xbf16> to vector<8x128xf32>
    %cst_12 = arith.constant dense<0.000000e+00> : vector<8x128xf32>
    %14 = tpu.matmul %10, %3, %cst_12 {dimension_numbers = #tpu.dot_dimension_numbers<[1], [0], [0], [1], [0, 0, 1, 1], [], []>} : vector<8x128xbf16>, vector<128x128xbf16>, vector<8x128xf32> -> vector<8x128xf32>
    %15 = arith.addf %13, %14 : vector<8x128xf32>
    %16 = arith.negf %15 : vector<8x128xf32>
    %17 = math.exp %16 : vector<8x128xf32>
    %cst_13 = arith.constant 1.000000e+00 : f32
    %18 = vector.broadcast %cst_13 : f32 to vector<8x128xf32>
    %19 = arith.addf %18, %17 : vector<8x128xf32>
    %20 = arith.divf %18, %19 : vector<8x128xf32>
    %21 = math.tanh %15 : vector<8x128xf32>
    %22 = vector.extract_strided_slice %20 {offsets = [0, 0], sizes = [8, 32], strides = [1, 1]} : vector<8x128xf32> to vector<8x32xf32>
    %23 = vector.extract_strided_slice %20 {offsets = [0, 32], sizes = [8, 32], strides = [1, 1]} : vector<8x128xf32> to vector<8x32xf32>
    %24 = vector.extract_strided_slice %20 {offsets = [0, 64], sizes = [8, 32], strides = [1, 1]} : vector<8x128xf32> to vector<8x32xf32>
    %25 = vector.extract_strided_slice %21 {offsets = [0, 96], sizes = [8, 32], strides = [1, 1]} : vector<8x128xf32> to vector<8x32xf32>
    %26 = arith.mulf %23, %8 : vector<8x32xf32>
    %27 = arith.mulf %22, %25 : vector<8x32xf32>
    %28 = arith.addf %26, %27 : vector<8x32xf32>
    %29 = math.tanh %28 : vector<8x32xf32>
    %30 = arith.mulf %24, %29 : vector<8x32xf32>
    %31 = tpu.concatenate %30, %5 in 1 : vector<8x32xf32>, vector<8x96xf32> -> vector<8x128xf32>
    %c32_i32 = arith.constant 32 : i32
    %32 = tpu.dynamic_rotate %31 by %c32_i32 dim 1 : vector<8x128xf32>, i32 -> vector<8x128xf32>
    %33 = arith.addf %31, %32 : vector<8x128xf32>
    %c64_i32 = arith.constant 64 : i32
    %34 = tpu.dynamic_rotate %33 by %c64_i32 dim 1 : vector<8x128xf32>, i32 -> vector<8x128xf32>
    %35 = arith.addf %33, %34 : vector<8x128xf32>
    %c0_14 = arith.constant 0 : index
    %c0_15 = arith.constant 0 : index
    %c0_16 = arith.constant 0 : index
    %36 = vector.load %arg5[%c0_14, %c0_15, %c0_16] : memref<1x8x512xf32, #tpu.memory_space<vmem>>, vector<1x8x32xf32>
    %37 = vector.shape_cast %36 : vector<1x8x32xf32> to vector<8x32xf32>
    %38 = vector.shape_cast %30 : vector<8x32xf32> to vector<1x8x32xf32>
    tpu.vector_store %arg5[%c0_14, %c0_15, %c0_16], %38 {strides = array<i32>} : memref<1x8x512xf32, #tpu.memory_space<vmem>>, vector<1x8x32xf32>,
    %39 = arith.mulf %35, %4 : vector<8x128xf32>
    %40 = arith.truncf %39 : vector<8x128xf32> to vector<8x128xbf16>
    %c1 = arith.constant 1 : index
    %c0_17 = arith.constant 0 : index
    %c0_18 = arith.constant 0 : index
    %41 = vector.load %arg2[%c1, %c0_17, %c0_18] : memref<16x8x128xbf16, #tpu.memory_space<vmem>>, vector<1x8x128xbf16>
    %42 = vector.shape_cast %41 : vector<1x8x128xbf16> to vector<8x128xbf16>
    %43 = arith.extf %42 : vector<8x128xbf16> to vector<8x128xf32>
    %cst_19 = arith.constant dense<0.000000e+00> : vector<8x128xf32>
    %44 = tpu.matmul %40, %3, %cst_19 {dimension_numbers = #tpu.dot_dimension_numbers<[1], [0], [0], [1], [0, 0, 1, 1], [], []>} : vector<8x128xbf16>, vector<128x128xbf16>, vector<8x128xf32> -> vector<8x128xf32>
    %45 = arith.addf %43, %44 : vector<8x128xf32>
    %46 = arith.negf %45 : vector<8x128xf32>
    %47 = math.exp %46 : vector<8x128xf32>
    %cst_20 = arith.constant 1.000000e+00 : f32
    %48 = vector.broadcast %cst_20 : f32 to vector<8x128xf32>
    %49 = arith.addf %48, %47 : vector<8x128xf32>
    %50 = arith.divf %48, %49 : vector<8x128xf32>
    %51 = math.tanh %45 : vector<8x128xf32>
    %52 = vector.extract_strided_slice %50 {offsets = [0, 0], sizes = [8, 32], strides = [1, 1]} : vector<8x128xf32> to vector<8x32xf32>
    %53 = vector.extract_strided_slice %50 {offsets = [0, 32], sizes = [8, 32], strides = [1, 1]} : vector<8x128xf32> to vector<8x32xf32>
    %54 = vector.extract_strided_slice %50 {offsets = [0, 64], sizes = [8, 32], strides = [1, 1]} : vector<8x128xf32> to vector<8x32xf32>
    %55 = vector.extract_strided_slice %51 {offsets = [0, 96], sizes = [8, 32], strides = [1, 1]} : vector<8x128xf32> to vector<8x32xf32>
    %56 = arith.mulf %53, %28 : vector<8x32xf32>
    %57 = arith.mulf %52, %55 : vector<8x32xf32>
    %58 = arith.addf %56, %57 : vector<8x32xf32>
    %59 = math.tanh %58 : vector<8x32xf32>
    %60 = arith.mulf %54, %59 : vector<8x32xf32>
    %61 = tpu.concatenate %60, %5 in 1 : vector<8x32xf32>, vector<8x96xf32> -> vector<8x128xf32>
    %c32_i32_21 = arith.constant 32 : i32
    %62 = tpu.dynamic_rotate %61 by %c32_i32_21 dim 1 : vector<8x128xf32>, i32 -> vector<8x128xf32>
    %63 = arith.addf %61, %62 : vector<8x128xf32>
    %c64_i32_22 = arith.constant 64 : i32
    %64 = tpu.dynamic_rotate %63 by %c64_i32_22 dim 1 : vector<8x128xf32>, i32 -> vector<8x128xf32>
    %65 = arith.addf %63, %64 : vector<8x128xf32>
    %c0_23 = arith.constant 0 : index
    %c0_24 = arith.constant 0 : index
    %c32 = arith.constant 32 : index
    %66 = vector.load %arg5[%c0_23, %c0_24, %c32] : memref<1x8x512xf32, #tpu.memory_space<vmem>>, vector<1x8x32xf32>
    %67 = vector.shape_cast %66 : vector<1x8x32xf32> to vector<8x32xf32>
    %68 = vector.shape_cast %60 : vector<8x32xf32> to vector<1x8x32xf32>
    tpu.vector_store %arg5[%c0_23, %c0_24, %c32], %68 {strides = array<i32>} : memref<1x8x512xf32, #tpu.memory_space<vmem>>, vector<1x8x32xf32>,
    %69 = arith.mulf %65, %4 : vector<8x128xf32>
    %70 = arith.truncf %69 : vector<8x128xf32> to vector<8x128xbf16>
    %c2 = arith.constant 2 : index
    %c0_25 = arith.constant 0 : index
    %c0_26 = arith.constant 0 : index
    %71 = vector.load %arg2[%c2, %c0_25, %c0_26] : memref<16x8x128xbf16, #tpu.memory_space<vmem>>, vector<1x8x128xbf16>
    %72 = vector.shape_cast %71 : vector<1x8x128xbf16> to vector<8x128xbf16>
    %73 = arith.extf %72 : vector<8x128xbf16> to vector<8x128xf32>
    %cst_27 = arith.constant dense<0.000000e+00> : vector<8x128xf32>
    %74 = tpu.matmul %70, %3, %cst_27 {dimension_numbers = #tpu.dot_dimension_numbers<[1], [0], [0], [1], [0, 0, 1, 1], [], []>} : vector<8x128xbf16>, vector<128x128xbf16>, vector<8x128xf32> -> vector<8x128xf32>
    %75 = arith.addf %73, %74 : vector<8x128xf32>
    %76 = arith.negf %75 : vector<8x128xf32>
    %77 = math.exp %76 : vector<8x128xf32>
    %cst_28 = arith.constant 1.000000e+00 : f32
    %78 = vector.broadcast %cst_28 : f32 to vector<8x128xf32>
    %79 = arith.addf %78, %77 : vector<8x128xf32>
    %80 = arith.divf %78, %79 : vector<8x128xf32>
    %81 = math.tanh %75 : vector<8x128xf32>
    %82 = vector.extract_strided_slice %80 {offsets = [0, 0], sizes = [8, 32], strides = [1, 1]} : vector<8x128xf32> to vector<8x32xf32>
    %83 = vector.extract_strided_slice %80 {offsets = [0, 32], sizes = [8, 32], strides = [1, 1]} : vector<8x128xf32> to vector<8x32xf32>
    %84 = vector.extract_strided_slice %80 {offsets = [0, 64], sizes = [8, 32], strides = [1, 1]} : vector<8x128xf32> to vector<8x32xf32>
    %85 = vector.extract_strided_slice %81 {offsets = [0, 96], sizes = [8, 32], strides = [1, 1]} : vector<8x128xf32> to vector<8x32xf32>
    %86 = arith.mulf %83, %58 : vector<8x32xf32>
    %87 = arith.mulf %82, %85 : vector<8x32xf32>
    %88 = arith.addf %86, %87 : vector<8x32xf32>
    %89 = math.tanh %88 : vector<8x32xf32>
    %90 = arith.mulf %84, %89 : vector<8x32xf32>
    %91 = tpu.concatenate %90, %5 in 1 : vector<8x32xf32>, vector<8x96xf32> -> vector<8x128xf32>
    %c32_i32_29 = arith.constant 32 : i32
    %92 = tpu.dynamic_rotate %91 by %c32_i32_29 dim 1 : vector<8x128xf32>, i32 -> vector<8x128xf32>
    %93 = arith.addf %91, %92 : vector<8x128xf32>
    %c64_i32_30 = arith.constant 64 : i32
    %94 = tpu.dynamic_rotate %93 by %c64_i32_30 dim 1 : vector<8x128xf32>, i32 -> vector<8x128xf32>
    %95 = arith.addf %93, %94 : vector<8x128xf32>
    %c0_31 = arith.constant 0 : index
    %c0_32 = arith.constant 0 : index
    %c64 = arith.constant 64 : index
    %96 = vector.load %arg5[%c0_31, %c0_32, %c64] : memref<1x8x512xf32, #tpu.memory_space<vmem>>, vector<1x8x32xf32>
    %97 = vector.shape_cast %96 : vector<1x8x32xf32> to vector<8x32xf32>
    %98 = vector.shape_cast %90 : vector<8x32xf32> to vector<1x8x32xf32>
    tpu.vector_store %arg5[%c0_31, %c0_32, %c64], %98 {strides = array<i32>} : memref<1x8x512xf32, #tpu.memory_space<vmem>>, vector<1x8x32xf32>,
    %99 = arith.mulf %95, %4 : vector<8x128xf32>
    %100 = arith.truncf %99 : vector<8x128xf32> to vector<8x128xbf16>
    %c3 = arith.constant 3 : index
    %c0_33 = arith.constant 0 : index
    %c0_34 = arith.constant 0 : index
    %101 = vector.load %arg2[%c3, %c0_33, %c0_34] : memref<16x8x128xbf16, #tpu.memory_space<vmem>>, vector<1x8x128xbf16>
    %102 = vector.shape_cast %101 : vector<1x8x128xbf16> to vector<8x128xbf16>
    %103 = arith.extf %102 : vector<8x128xbf16> to vector<8x128xf32>
    %cst_35 = arith.constant dense<0.000000e+00> : vector<8x128xf32>
    %104 = tpu.matmul %100, %3, %cst_35 {dimension_numbers = #tpu.dot_dimension_numbers<[1], [0], [0], [1], [0, 0, 1, 1], [], []>} : vector<8x128xbf16>, vector<128x128xbf16>, vector<8x128xf32> -> vector<8x128xf32>
    %105 = arith.addf %103, %104 : vector<8x128xf32>
    %106 = arith.negf %105 : vector<8x128xf32>
    %107 = math.exp %106 : vector<8x128xf32>
    %cst_36 = arith.constant 1.000000e+00 : f32
    %108 = vector.broadcast %cst_36 : f32 to vector<8x128xf32>
    %109 = arith.addf %108, %107 : vector<8x128xf32>
    %110 = arith.divf %108, %109 : vector<8x128xf32>
    %111 = math.tanh %105 : vector<8x128xf32>
    %112 = vector.extract_strided_slice %110 {offsets = [0, 0], sizes = [8, 32], strides = [1, 1]} : vector<8x128xf32> to vector<8x32xf32>
    %113 = vector.extract_strided_slice %110 {offsets = [0, 32], sizes = [8, 32], strides = [1, 1]} : vector<8x128xf32> to vector<8x32xf32>
    %114 = vector.extract_strided_slice %110 {offsets = [0, 64], sizes = [8, 32], strides = [1, 1]} : vector<8x128xf32> to vector<8x32xf32>
    %115 = vector.extract_strided_slice %111 {offsets = [0, 96], sizes = [8, 32], strides = [1, 1]} : vector<8x128xf32> to vector<8x32xf32>
    %116 = arith.mulf %113, %88 : vector<8x32xf32>
    %117 = arith.mulf %112, %115 : vector<8x32xf32>
    %118 = arith.addf %116, %117 : vector<8x32xf32>
    %119 = math.tanh %118 : vector<8x32xf32>
    %120 = arith.mulf %114, %119 : vector<8x32xf32>
    %121 = tpu.concatenate %120, %5 in 1 : vector<8x32xf32>, vector<8x96xf32> -> vector<8x128xf32>
    %c32_i32_37 = arith.constant 32 : i32
    %122 = tpu.dynamic_rotate %121 by %c32_i32_37 dim 1 : vector<8x128xf32>, i32 -> vector<8x128xf32>
    %123 = arith.addf %121, %122 : vector<8x128xf32>
    %c64_i32_38 = arith.constant 64 : i32
    %124 = tpu.dynamic_rotate %123 by %c64_i32_38 dim 1 : vector<8x128xf32>, i32 -> vector<8x128xf32>
    %125 = arith.addf %123, %124 : vector<8x128xf32>
    %c0_39 = arith.constant 0 : index
    %c0_40 = arith.constant 0 : index
    %c96 = arith.constant 96 : index
    %126 = vector.load %arg5[%c0_39, %c0_40, %c96] : memref<1x8x512xf32, #tpu.memory_space<vmem>>, vector<1x8x32xf32>
    %127 = vector.shape_cast %126 : vector<1x8x32xf32> to vector<8x32xf32>
    %128 = vector.shape_cast %120 : vector<8x32xf32> to vector<1x8x32xf32>
    tpu.vector_store %arg5[%c0_39, %c0_40, %c96], %128 {strides = array<i32>} : memref<1x8x512xf32, #tpu.memory_space<vmem>>, vector<1x8x32xf32>,
    %129 = arith.mulf %125, %4 : vector<8x128xf32>
    %130 = arith.truncf %129 : vector<8x128xf32> to vector<8x128xbf16>
    %c4 = arith.constant 4 : index
    %c0_41 = arith.constant 0 : index
    %c0_42 = arith.constant 0 : index
    %131 = vector.load %arg2[%c4, %c0_41, %c0_42] : memref<16x8x128xbf16, #tpu.memory_space<vmem>>, vector<1x8x128xbf16>
    %132 = vector.shape_cast %131 : vector<1x8x128xbf16> to vector<8x128xbf16>
    %133 = arith.extf %132 : vector<8x128xbf16> to vector<8x128xf32>
    %cst_43 = arith.constant dense<0.000000e+00> : vector<8x128xf32>
    %134 = tpu.matmul %130, %3, %cst_43 {dimension_numbers = #tpu.dot_dimension_numbers<[1], [0], [0], [1], [0, 0, 1, 1], [], []>} : vector<8x128xbf16>, vector<128x128xbf16>, vector<8x128xf32> -> vector<8x128xf32>
    %135 = arith.addf %133, %134 : vector<8x128xf32>
    %136 = arith.negf %135 : vector<8x128xf32>
    %137 = math.exp %136 : vector<8x128xf32>
    %cst_44 = arith.constant 1.000000e+00 : f32
    %138 = vector.broadcast %cst_44 : f32 to vector<8x128xf32>
    %139 = arith.addf %138, %137 : vector<8x128xf32>
    %140 = arith.divf %138, %139 : vector<8x128xf32>
    %141 = math.tanh %135 : vector<8x128xf32>
    %142 = vector.extract_strided_slice %140 {offsets = [0, 0], sizes = [8, 32], strides = [1, 1]} : vector<8x128xf32> to vector<8x32xf32>
    %143 = vector.extract_strided_slice %140 {offsets = [0, 32], sizes = [8, 32], strides = [1, 1]} : vector<8x128xf32> to vector<8x32xf32>
    %144 = vector.extract_strided_slice %140 {offsets = [0, 64], sizes = [8, 32], strides = [1, 1]} : vector<8x128xf32> to vector<8x32xf32>
    %145 = vector.extract_strided_slice %141 {offsets = [0, 96], sizes = [8, 32], strides = [1, 1]} : vector<8x128xf32> to vector<8x32xf32>
    %146 = arith.mulf %143, %118 : vector<8x32xf32>
    %147 = arith.mulf %142, %145 : vector<8x32xf32>
    %148 = arith.addf %146, %147 : vector<8x32xf32>
    %149 = math.tanh %148 : vector<8x32xf32>
    %150 = arith.mulf %144, %149 : vector<8x32xf32>
    %151 = tpu.concatenate %150, %5 in 1 : vector<8x32xf32>, vector<8x96xf32> -> vector<8x128xf32>
    %c32_i32_45 = arith.constant 32 : i32
    %152 = tpu.dynamic_rotate %151 by %c32_i32_45 dim 1 : vector<8x128xf32>, i32 -> vector<8x128xf32>
    %153 = arith.addf %151, %152 : vector<8x128xf32>
    %c64_i32_46 = arith.constant 64 : i32
    %154 = tpu.dynamic_rotate %153 by %c64_i32_46 dim 1 : vector<8x128xf32>, i32 -> vector<8x128xf32>
    %155 = arith.addf %153, %154 : vector<8x128xf32>
    %c0_47 = arith.constant 0 : index
    %c0_48 = arith.constant 0 : index
    %c128 = arith.constant 128 : index
    %156 = vector.load %arg5[%c0_47, %c0_48, %c128] : memref<1x8x512xf32, #tpu.memory_space<vmem>>, vector<1x8x32xf32>
    %157 = vector.shape_cast %156 : vector<1x8x32xf32> to vector<8x32xf32>
    %158 = vector.shape_cast %150 : vector<8x32xf32> to vector<1x8x32xf32>
    tpu.vector_store %arg5[%c0_47, %c0_48, %c128], %158 {strides = array<i32>} : memref<1x8x512xf32, #tpu.memory_space<vmem>>, vector<1x8x32xf32>,
    %159 = arith.mulf %155, %4 : vector<8x128xf32>
    %160 = arith.truncf %159 : vector<8x128xf32> to vector<8x128xbf16>
    %c5 = arith.constant 5 : index
    %c0_49 = arith.constant 0 : index
    %c0_50 = arith.constant 0 : index
    %161 = vector.load %arg2[%c5, %c0_49, %c0_50] : memref<16x8x128xbf16, #tpu.memory_space<vmem>>, vector<1x8x128xbf16>
    %162 = vector.shape_cast %161 : vector<1x8x128xbf16> to vector<8x128xbf16>
    %163 = arith.extf %162 : vector<8x128xbf16> to vector<8x128xf32>
    %cst_51 = arith.constant dense<0.000000e+00> : vector<8x128xf32>
    %164 = tpu.matmul %160, %3, %cst_51 {dimension_numbers = #tpu.dot_dimension_numbers<[1], [0], [0], [1], [0, 0, 1, 1], [], []>} : vector<8x128xbf16>, vector<128x128xbf16>, vector<8x128xf32> -> vector<8x128xf32>
    %165 = arith.addf %163, %164 : vector<8x128xf32>
    %166 = arith.negf %165 : vector<8x128xf32>
    %167 = math.exp %166 : vector<8x128xf32>
    %cst_52 = arith.constant 1.000000e+00 : f32
    %168 = vector.broadcast %cst_52 : f32 to vector<8x128xf32>
    %169 = arith.addf %168, %167 : vector<8x128xf32>
    %170 = arith.divf %168, %169 : vector<8x128xf32>
    %171 = math.tanh %165 : vector<8x128xf32>
    %172 = vector.extract_strided_slice %170 {offsets = [0, 0], sizes = [8, 32], strides = [1, 1]} : vector<8x128xf32> to vector<8x32xf32>
    %173 = vector.extract_strided_slice %170 {offsets = [0, 32], sizes = [8, 32], strides = [1, 1]} : vector<8x128xf32> to vector<8x32xf32>
    %174 = vector.extract_strided_slice %170 {offsets = [0, 64], sizes = [8, 32], strides = [1, 1]} : vector<8x128xf32> to vector<8x32xf32>
    %175 = vector.extract_strided_slice %171 {offsets = [0, 96], sizes = [8, 32], strides = [1, 1]} : vector<8x128xf32> to vector<8x32xf32>
    %176 = arith.mulf %173, %148 : vector<8x32xf32>
    %177 = arith.mulf %172, %175 : vector<8x32xf32>
    %178 = arith.addf %176, %177 : vector<8x32xf32>
    %179 = math.tanh %178 : vector<8x32xf32>
    %180 = arith.mulf %174, %179 : vector<8x32xf32>
    %181 = tpu.concatenate %180, %5 in 1 : vector<8x32xf32>, vector<8x96xf32> -> vector<8x128xf32>
    %c32_i32_53 = arith.constant 32 : i32
    %182 = tpu.dynamic_rotate %181 by %c32_i32_53 dim 1 : vector<8x128xf32>, i32 -> vector<8x128xf32>
    %183 = arith.addf %181, %182 : vector<8x128xf32>
    %c64_i32_54 = arith.constant 64 : i32
    %184 = tpu.dynamic_rotate %183 by %c64_i32_54 dim 1 : vector<8x128xf32>, i32 -> vector<8x128xf32>
    %185 = arith.addf %183, %184 : vector<8x128xf32>
    %c0_55 = arith.constant 0 : index
    %c0_56 = arith.constant 0 : index
    %c160 = arith.constant 160 : index
    %186 = vector.load %arg5[%c0_55, %c0_56, %c160] : memref<1x8x512xf32, #tpu.memory_space<vmem>>, vector<1x8x32xf32>
    %187 = vector.shape_cast %186 : vector<1x8x32xf32> to vector<8x32xf32>
    %188 = vector.shape_cast %180 : vector<8x32xf32> to vector<1x8x32xf32>
    tpu.vector_store %arg5[%c0_55, %c0_56, %c160], %188 {strides = array<i32>} : memref<1x8x512xf32, #tpu.memory_space<vmem>>, vector<1x8x32xf32>,
    %189 = arith.mulf %185, %4 : vector<8x128xf32>
    %190 = arith.truncf %189 : vector<8x128xf32> to vector<8x128xbf16>
    %c6 = arith.constant 6 : index
    %c0_57 = arith.constant 0 : index
    %c0_58 = arith.constant 0 : index
    %191 = vector.load %arg2[%c6, %c0_57, %c0_58] : memref<16x8x128xbf16, #tpu.memory_space<vmem>>, vector<1x8x128xbf16>
    %192 = vector.shape_cast %191 : vector<1x8x128xbf16> to vector<8x128xbf16>
    %193 = arith.extf %192 : vector<8x128xbf16> to vector<8x128xf32>
    %cst_59 = arith.constant dense<0.000000e+00> : vector<8x128xf32>
    %194 = tpu.matmul %190, %3, %cst_59 {dimension_numbers = #tpu.dot_dimension_numbers<[1], [0], [0], [1], [0, 0, 1, 1], [], []>} : vector<8x128xbf16>, vector<128x128xbf16>, vector<8x128xf32> -> vector<8x128xf32>
    %195 = arith.addf %193, %194 : vector<8x128xf32>
    %196 = arith.negf %195 : vector<8x128xf32>
    %197 = math.exp %196 : vector<8x128xf32>
    %cst_60 = arith.constant 1.000000e+00 : f32
    %198 = vector.broadcast %cst_60 : f32 to vector<8x128xf32>
    %199 = arith.addf %198, %197 : vector<8x128xf32>
    %200 = arith.divf %198, %199 : vector<8x128xf32>
    %201 = math.tanh %195 : vector<8x128xf32>
    %202 = vector.extract_strided_slice %200 {offsets = [0, 0], sizes = [8, 32], strides = [1, 1]} : vector<8x128xf32> to vector<8x32xf32>
    %203 = vector.extract_strided_slice %200 {offsets = [0, 32], sizes = [8, 32], strides = [1, 1]} : vector<8x128xf32> to vector<8x32xf32>
    %204 = vector.extract_strided_slice %200 {offsets = [0, 64], sizes = [8, 32], strides = [1, 1]} : vector<8x128xf32> to vector<8x32xf32>
    %205 = vector.extract_strided_slice %201 {offsets = [0, 96], sizes = [8, 32], strides = [1, 1]} : vector<8x128xf32> to vector<8x32xf32>
    %206 = arith.mulf %203, %178 : vector<8x32xf32>
    %207 = arith.mulf %202, %205 : vector<8x32xf32>
    %208 = arith.addf %206, %207 : vector<8x32xf32>
    %209 = math.tanh %208 : vector<8x32xf32>
    %210 = arith.mulf %204, %209 : vector<8x32xf32>
    %211 = tpu.concatenate %210, %5 in 1 : vector<8x32xf32>, vector<8x96xf32> -> vector<8x128xf32>
    %c32_i32_61 = arith.constant 32 : i32
    %212 = tpu.dynamic_rotate %211 by %c32_i32_61 dim 1 : vector<8x128xf32>, i32 -> vector<8x128xf32>
    %213 = arith.addf %211, %212 : vector<8x128xf32>
    %c64_i32_62 = arith.constant 64 : i32
    %214 = tpu.dynamic_rotate %213 by %c64_i32_62 dim 1 : vector<8x128xf32>, i32 -> vector<8x128xf32>
    %215 = arith.addf %213, %214 : vector<8x128xf32>
    %c0_63 = arith.constant 0 : index
    %c0_64 = arith.constant 0 : index
    %c192 = arith.constant 192 : index
    %216 = vector.load %arg5[%c0_63, %c0_64, %c192] : memref<1x8x512xf32, #tpu.memory_space<vmem>>, vector<1x8x32xf32>
    %217 = vector.shape_cast %216 : vector<1x8x32xf32> to vector<8x32xf32>
    %218 = vector.shape_cast %210 : vector<8x32xf32> to vector<1x8x32xf32>
    tpu.vector_store %arg5[%c0_63, %c0_64, %c192], %218 {strides = array<i32>} : memref<1x8x512xf32, #tpu.memory_space<vmem>>, vector<1x8x32xf32>,
    %219 = arith.mulf %215, %4 : vector<8x128xf32>
    %220 = arith.truncf %219 : vector<8x128xf32> to vector<8x128xbf16>
    %c7 = arith.constant 7 : index
    %c0_65 = arith.constant 0 : index
    %c0_66 = arith.constant 0 : index
    %221 = vector.load %arg2[%c7, %c0_65, %c0_66] : memref<16x8x128xbf16, #tpu.memory_space<vmem>>, vector<1x8x128xbf16>
    %222 = vector.shape_cast %221 : vector<1x8x128xbf16> to vector<8x128xbf16>
    %223 = arith.extf %222 : vector<8x128xbf16> to vector<8x128xf32>
    %cst_67 = arith.constant dense<0.000000e+00> : vector<8x128xf32>
    %224 = tpu.matmul %220, %3, %cst_67 {dimension_numbers = #tpu.dot_dimension_numbers<[1], [0], [0], [1], [0, 0, 1, 1], [], []>} : vector<8x128xbf16>, vector<128x128xbf16>, vector<8x128xf32> -> vector<8x128xf32>
    %225 = arith.addf %223, %224 : vector<8x128xf32>
    %226 = arith.negf %225 : vector<8x128xf32>
    %227 = math.exp %226 : vector<8x128xf32>
    %cst_68 = arith.constant 1.000000e+00 : f32
    %228 = vector.broadcast %cst_68 : f32 to vector<8x128xf32>
    %229 = arith.addf %228, %227 : vector<8x128xf32>
    %230 = arith.divf %228, %229 : vector<8x128xf32>
    %231 = math.tanh %225 : vector<8x128xf32>
    %232 = vector.extract_strided_slice %230 {offsets = [0, 0], sizes = [8, 32], strides = [1, 1]} : vector<8x128xf32> to vector<8x32xf32>
    %233 = vector.extract_strided_slice %230 {offsets = [0, 32], sizes = [8, 32], strides = [1, 1]} : vector<8x128xf32> to vector<8x32xf32>
    %234 = vector.extract_strided_slice %230 {offsets = [0, 64], sizes = [8, 32], strides = [1, 1]} : vector<8x128xf32> to vector<8x32xf32>
    %235 = vector.extract_strided_slice %231 {offsets = [0, 96], sizes = [8, 32], strides = [1, 1]} : vector<8x128xf32> to vector<8x32xf32>
    %236 = arith.mulf %233, %208 : vector<8x32xf32>
    %237 = arith.mulf %232, %235 : vector<8x32xf32>
    %238 = arith.addf %236, %237 : vector<8x32xf32>
    %239 = math.tanh %238 : vector<8x32xf32>
    %240 = arith.mulf %234, %239 : vector<8x32xf32>
    %241 = tpu.concatenate %240, %5 in 1 : vector<8x32xf32>, vector<8x96xf32> -> vector<8x128xf32>
    %c32_i32_69 = arith.constant 32 : i32
    %242 = tpu.dynamic_rotate %241 by %c32_i32_69 dim 1 : vector<8x128xf32>, i32 -> vector<8x128xf32>
    %243 = arith.addf %241, %242 : vector<8x128xf32>
    %c64_i32_70 = arith.constant 64 : i32
    %244 = tpu.dynamic_rotate %243 by %c64_i32_70 dim 1 : vector<8x128xf32>, i32 -> vector<8x128xf32>
    %245 = arith.addf %243, %244 : vector<8x128xf32>
    %c0_71 = arith.constant 0 : index
    %c0_72 = arith.constant 0 : index
    %c224 = arith.constant 224 : index
    %246 = vector.load %arg5[%c0_71, %c0_72, %c224] : memref<1x8x512xf32, #tpu.memory_space<vmem>>, vector<1x8x32xf32>
    %247 = vector.shape_cast %246 : vector<1x8x32xf32> to vector<8x32xf32>
    %248 = vector.shape_cast %240 : vector<8x32xf32> to vector<1x8x32xf32>
    tpu.vector_store %arg5[%c0_71, %c0_72, %c224], %248 {strides = array<i32>} : memref<1x8x512xf32, #tpu.memory_space<vmem>>, vector<1x8x32xf32>,
    %249 = arith.mulf %245, %4 : vector<8x128xf32>
    %250 = arith.truncf %249 : vector<8x128xf32> to vector<8x128xbf16>
    %c8 = arith.constant 8 : index
    %c0_73 = arith.constant 0 : index
    %c0_74 = arith.constant 0 : index
    %251 = vector.load %arg2[%c8, %c0_73, %c0_74] : memref<16x8x128xbf16, #tpu.memory_space<vmem>>, vector<1x8x128xbf16>
    %252 = vector.shape_cast %251 : vector<1x8x128xbf16> to vector<8x128xbf16>
    %253 = arith.extf %252 : vector<8x128xbf16> to vector<8x128xf32>
    %cst_75 = arith.constant dense<0.000000e+00> : vector<8x128xf32>
    %254 = tpu.matmul %250, %3, %cst_75 {dimension_numbers = #tpu.dot_dimension_numbers<[1], [0], [0], [1], [0, 0, 1, 1], [], []>} : vector<8x128xbf16>, vector<128x128xbf16>, vector<8x128xf32> -> vector<8x128xf32>
    %255 = arith.addf %253, %254 : vector<8x128xf32>
    %256 = arith.negf %255 : vector<8x128xf32>
    %257 = math.exp %256 : vector<8x128xf32>
    %cst_76 = arith.constant 1.000000e+00 : f32
    %258 = vector.broadcast %cst_76 : f32 to vector<8x128xf32>
    %259 = arith.addf %258, %257 : vector<8x128xf32>
    %260 = arith.divf %258, %259 : vector<8x128xf32>
    %261 = math.tanh %255 : vector<8x128xf32>
    %262 = vector.extract_strided_slice %260 {offsets = [0, 0], sizes = [8, 32], strides = [1, 1]} : vector<8x128xf32> to vector<8x32xf32>
    %263 = vector.extract_strided_slice %260 {offsets = [0, 32], sizes = [8, 32], strides = [1, 1]} : vector<8x128xf32> to vector<8x32xf32>
    %264 = vector.extract_strided_slice %260 {offsets = [0, 64], sizes = [8, 32], strides = [1, 1]} : vector<8x128xf32> to vector<8x32xf32>
    %265 = vector.extract_strided_slice %261 {offsets = [0, 96], sizes = [8, 32], strides = [1, 1]} : vector<8x128xf32> to vector<8x32xf32>
    %266 = arith.mulf %263, %238 : vector<8x32xf32>
    %267 = arith.mulf %262, %265 : vector<8x32xf32>
    %268 = arith.addf %266, %267 : vector<8x32xf32>
    %269 = math.tanh %268 : vector<8x32xf32>
    %270 = arith.mulf %264, %269 : vector<8x32xf32>
    %271 = tpu.concatenate %270, %5 in 1 : vector<8x32xf32>, vector<8x96xf32> -> vector<8x128xf32>
    %c32_i32_77 = arith.constant 32 : i32
    %272 = tpu.dynamic_rotate %271 by %c32_i32_77 dim 1 : vector<8x128xf32>, i32 -> vector<8x128xf32>
    %273 = arith.addf %271, %272 : vector<8x128xf32>
    %c64_i32_78 = arith.constant 64 : i32
    %274 = tpu.dynamic_rotate %273 by %c64_i32_78 dim 1 : vector<8x128xf32>, i32 -> vector<8x128xf32>
    %275 = arith.addf %273, %274 : vector<8x128xf32>
    %276 = arith.select %6, %268, %238 : vector<8x32xf32>
    %277 = arith.select %6, %275, %245 : vector<8x128xf32>
    %c0_79 = arith.constant 0 : index
    %c0_80 = arith.constant 0 : index
    %c256 = arith.constant 256 : index
    %278 = vector.load %arg5[%c0_79, %c0_80, %c256] : memref<1x8x512xf32, #tpu.memory_space<vmem>>, vector<1x8x32xf32>
    %279 = vector.shape_cast %278 : vector<1x8x32xf32> to vector<8x32xf32>
    %280 = vector.shape_cast %270 : vector<8x32xf32> to vector<1x8x32xf32>
    tpu.vector_store %arg5[%c0_79, %c0_80, %c256], %280 {strides = array<i32>} : memref<1x8x512xf32, #tpu.memory_space<vmem>>, vector<1x8x32xf32>,
    %281 = arith.mulf %277, %4 : vector<8x128xf32>
    %282 = arith.truncf %281 : vector<8x128xf32> to vector<8x128xbf16>
    %c9 = arith.constant 9 : index
    %c0_81 = arith.constant 0 : index
    %c0_82 = arith.constant 0 : index
    %283 = vector.load %arg2[%c9, %c0_81, %c0_82] : memref<16x8x128xbf16, #tpu.memory_space<vmem>>, vector<1x8x128xbf16>
    %284 = vector.shape_cast %283 : vector<1x8x128xbf16> to vector<8x128xbf16>
    %285 = arith.extf %284 : vector<8x128xbf16> to vector<8x128xf32>
    %cst_83 = arith.constant dense<0.000000e+00> : vector<8x128xf32>
    %286 = tpu.matmul %282, %3, %cst_83 {dimension_numbers = #tpu.dot_dimension_numbers<[1], [0], [0], [1], [0, 0, 1, 1], [], []>} : vector<8x128xbf16>, vector<128x128xbf16>, vector<8x128xf32> -> vector<8x128xf32>
    %287 = arith.addf %285, %286 : vector<8x128xf32>
    %288 = arith.negf %287 : vector<8x128xf32>
    %289 = math.exp %288 : vector<8x128xf32>
    %cst_84 = arith.constant 1.000000e+00 : f32
    %290 = vector.broadcast %cst_84 : f32 to vector<8x128xf32>
    %291 = arith.addf %290, %289 : vector<8x128xf32>
    %292 = arith.divf %290, %291 : vector<8x128xf32>
    %293 = math.tanh %287 : vector<8x128xf32>
    %294 = vector.extract_strided_slice %292 {offsets = [0, 0], sizes = [8, 32], strides = [1, 1]} : vector<8x128xf32> to vector<8x32xf32>
    %295 = vector.extract_strided_slice %292 {offsets = [0, 32], sizes = [8, 32], strides = [1, 1]} : vector<8x128xf32> to vector<8x32xf32>
    %296 = vector.extract_strided_slice %292 {offsets = [0, 64], sizes = [8, 32], strides = [1, 1]} : vector<8x128xf32> to vector<8x32xf32>
    %297 = vector.extract_strided_slice %293 {offsets = [0, 96], sizes = [8, 32], strides = [1, 1]} : vector<8x128xf32> to vector<8x32xf32>
    %298 = arith.mulf %295, %276 : vector<8x32xf32>
    %299 = arith.mulf %294, %297 : vector<8x32xf32>
    %300 = arith.addf %298, %299 : vector<8x32xf32>
    %301 = math.tanh %300 : vector<8x32xf32>
    %302 = arith.mulf %296, %301 : vector<8x32xf32>
    %303 = tpu.concatenate %302, %5 in 1 : vector<8x32xf32>, vector<8x96xf32> -> vector<8x128xf32>
    %c32_i32_85 = arith.constant 32 : i32
    %304 = tpu.dynamic_rotate %303 by %c32_i32_85 dim 1 : vector<8x128xf32>, i32 -> vector<8x128xf32>
    %305 = arith.addf %303, %304 : vector<8x128xf32>
    %c64_i32_86 = arith.constant 64 : i32
    %306 = tpu.dynamic_rotate %305 by %c64_i32_86 dim 1 : vector<8x128xf32>, i32 -> vector<8x128xf32>
    %307 = arith.addf %305, %306 : vector<8x128xf32>
    %308 = arith.select %6, %300, %276 : vector<8x32xf32>
    %309 = arith.select %6, %307, %277 : vector<8x128xf32>
    %c0_87 = arith.constant 0 : index
    %c0_88 = arith.constant 0 : index
    %c288 = arith.constant 288 : index
    %310 = vector.load %arg5[%c0_87, %c0_88, %c288] : memref<1x8x512xf32, #tpu.memory_space<vmem>>, vector<1x8x32xf32>
    %311 = vector.shape_cast %310 : vector<1x8x32xf32> to vector<8x32xf32>
    %312 = vector.shape_cast %302 : vector<8x32xf32> to vector<1x8x32xf32>
    tpu.vector_store %arg5[%c0_87, %c0_88, %c288], %312 {strides = array<i32>} : memref<1x8x512xf32, #tpu.memory_space<vmem>>, vector<1x8x32xf32>,
    %313 = arith.mulf %309, %4 : vector<8x128xf32>
    %314 = arith.truncf %313 : vector<8x128xf32> to vector<8x128xbf16>
    %c10 = arith.constant 10 : index
    %c0_89 = arith.constant 0 : index
    %c0_90 = arith.constant 0 : index
    %315 = vector.load %arg2[%c10, %c0_89, %c0_90] : memref<16x8x128xbf16, #tpu.memory_space<vmem>>, vector<1x8x128xbf16>
    %316 = vector.shape_cast %315 : vector<1x8x128xbf16> to vector<8x128xbf16>
    %317 = arith.extf %316 : vector<8x128xbf16> to vector<8x128xf32>
    %cst_91 = arith.constant dense<0.000000e+00> : vector<8x128xf32>
    %318 = tpu.matmul %314, %3, %cst_91 {dimension_numbers = #tpu.dot_dimension_numbers<[1], [0], [0], [1], [0, 0, 1, 1], [], []>} : vector<8x128xbf16>, vector<128x128xbf16>, vector<8x128xf32> -> vector<8x128xf32>
    %319 = arith.addf %317, %318 : vector<8x128xf32>
    %320 = arith.negf %319 : vector<8x128xf32>
    %321 = math.exp %320 : vector<8x128xf32>
    %cst_92 = arith.constant 1.000000e+00 : f32
    %322 = vector.broadcast %cst_92 : f32 to vector<8x128xf32>
    %323 = arith.addf %322, %321 : vector<8x128xf32>
    %324 = arith.divf %322, %323 : vector<8x128xf32>
    %325 = math.tanh %319 : vector<8x128xf32>
    %326 = vector.extract_strided_slice %324 {offsets = [0, 0], sizes = [8, 32], strides = [1, 1]} : vector<8x128xf32> to vector<8x32xf32>
    %327 = vector.extract_strided_slice %324 {offsets = [0, 32], sizes = [8, 32], strides = [1, 1]} : vector<8x128xf32> to vector<8x32xf32>
    %328 = vector.extract_strided_slice %324 {offsets = [0, 64], sizes = [8, 32], strides = [1, 1]} : vector<8x128xf32> to vector<8x32xf32>
    %329 = vector.extract_strided_slice %325 {offsets = [0, 96], sizes = [8, 32], strides = [1, 1]} : vector<8x128xf32> to vector<8x32xf32>
    %330 = arith.mulf %327, %308 : vector<8x32xf32>
    %331 = arith.mulf %326, %329 : vector<8x32xf32>
    %332 = arith.addf %330, %331 : vector<8x32xf32>
    %333 = math.tanh %332 : vector<8x32xf32>
    %334 = arith.mulf %328, %333 : vector<8x32xf32>
    %335 = tpu.concatenate %334, %5 in 1 : vector<8x32xf32>, vector<8x96xf32> -> vector<8x128xf32>
    %c32_i32_93 = arith.constant 32 : i32
    %336 = tpu.dynamic_rotate %335 by %c32_i32_93 dim 1 : vector<8x128xf32>, i32 -> vector<8x128xf32>
    %337 = arith.addf %335, %336 : vector<8x128xf32>
    %c64_i32_94 = arith.constant 64 : i32
    %338 = tpu.dynamic_rotate %337 by %c64_i32_94 dim 1 : vector<8x128xf32>, i32 -> vector<8x128xf32>
    %339 = arith.addf %337, %338 : vector<8x128xf32>
    %340 = arith.select %6, %332, %308 : vector<8x32xf32>
    %341 = arith.select %6, %339, %309 : vector<8x128xf32>
    %c0_95 = arith.constant 0 : index
    %c0_96 = arith.constant 0 : index
    %c320 = arith.constant 320 : index
    %342 = vector.load %arg5[%c0_95, %c0_96, %c320] : memref<1x8x512xf32, #tpu.memory_space<vmem>>, vector<1x8x32xf32>
    %343 = vector.shape_cast %342 : vector<1x8x32xf32> to vector<8x32xf32>
    %344 = vector.shape_cast %334 : vector<8x32xf32> to vector<1x8x32xf32>
    tpu.vector_store %arg5[%c0_95, %c0_96, %c320], %344 {strides = array<i32>} : memref<1x8x512xf32, #tpu.memory_space<vmem>>, vector<1x8x32xf32>,
    %345 = arith.mulf %341, %4 : vector<8x128xf32>
    %346 = arith.truncf %345 : vector<8x128xf32> to vector<8x128xbf16>
    %c11 = arith.constant 11 : index
    %c0_97 = arith.constant 0 : index
    %c0_98 = arith.constant 0 : index
    %347 = vector.load %arg2[%c11, %c0_97, %c0_98] : memref<16x8x128xbf16, #tpu.memory_space<vmem>>, vector<1x8x128xbf16>
    %348 = vector.shape_cast %347 : vector<1x8x128xbf16> to vector<8x128xbf16>
    %349 = arith.extf %348 : vector<8x128xbf16> to vector<8x128xf32>
    %cst_99 = arith.constant dense<0.000000e+00> : vector<8x128xf32>
    %350 = tpu.matmul %346, %3, %cst_99 {dimension_numbers = #tpu.dot_dimension_numbers<[1], [0], [0], [1], [0, 0, 1, 1], [], []>} : vector<8x128xbf16>, vector<128x128xbf16>, vector<8x128xf32> -> vector<8x128xf32>
    %351 = arith.addf %349, %350 : vector<8x128xf32>
    %352 = arith.negf %351 : vector<8x128xf32>
    %353 = math.exp %352 : vector<8x128xf32>
    %cst_100 = arith.constant 1.000000e+00 : f32
    %354 = vector.broadcast %cst_100 : f32 to vector<8x128xf32>
    %355 = arith.addf %354, %353 : vector<8x128xf32>
    %356 = arith.divf %354, %355 : vector<8x128xf32>
    %357 = math.tanh %351 : vector<8x128xf32>
    %358 = vector.extract_strided_slice %356 {offsets = [0, 0], sizes = [8, 32], strides = [1, 1]} : vector<8x128xf32> to vector<8x32xf32>
    %359 = vector.extract_strided_slice %356 {offsets = [0, 32], sizes = [8, 32], strides = [1, 1]} : vector<8x128xf32> to vector<8x32xf32>
    %360 = vector.extract_strided_slice %356 {offsets = [0, 64], sizes = [8, 32], strides = [1, 1]} : vector<8x128xf32> to vector<8x32xf32>
    %361 = vector.extract_strided_slice %357 {offsets = [0, 96], sizes = [8, 32], strides = [1, 1]} : vector<8x128xf32> to vector<8x32xf32>
    %362 = arith.mulf %359, %340 : vector<8x32xf32>
    %363 = arith.mulf %358, %361 : vector<8x32xf32>
    %364 = arith.addf %362, %363 : vector<8x32xf32>
    %365 = math.tanh %364 : vector<8x32xf32>
    %366 = arith.mulf %360, %365 : vector<8x32xf32>
    %367 = tpu.concatenate %366, %5 in 1 : vector<8x32xf32>, vector<8x96xf32> -> vector<8x128xf32>
    %c32_i32_101 = arith.constant 32 : i32
    %368 = tpu.dynamic_rotate %367 by %c32_i32_101 dim 1 : vector<8x128xf32>, i32 -> vector<8x128xf32>
    %369 = arith.addf %367, %368 : vector<8x128xf32>
    %c64_i32_102 = arith.constant 64 : i32
    %370 = tpu.dynamic_rotate %369 by %c64_i32_102 dim 1 : vector<8x128xf32>, i32 -> vector<8x128xf32>
    %371 = arith.addf %369, %370 : vector<8x128xf32>
    %372 = arith.select %6, %364, %340 : vector<8x32xf32>
    %373 = arith.select %6, %371, %341 : vector<8x128xf32>
    %c0_103 = arith.constant 0 : index
    %c0_104 = arith.constant 0 : index
    %c352 = arith.constant 352 : index
    %374 = vector.load %arg5[%c0_103, %c0_104, %c352] : memref<1x8x512xf32, #tpu.memory_space<vmem>>, vector<1x8x32xf32>
    %375 = vector.shape_cast %374 : vector<1x8x32xf32> to vector<8x32xf32>
    %376 = vector.shape_cast %366 : vector<8x32xf32> to vector<1x8x32xf32>
    tpu.vector_store %arg5[%c0_103, %c0_104, %c352], %376 {strides = array<i32>} : memref<1x8x512xf32, #tpu.memory_space<vmem>>, vector<1x8x32xf32>,
    %377 = arith.mulf %373, %4 : vector<8x128xf32>
    %378 = arith.truncf %377 : vector<8x128xf32> to vector<8x128xbf16>
    %c12 = arith.constant 12 : index
    %c0_105 = arith.constant 0 : index
    %c0_106 = arith.constant 0 : index
    %379 = vector.load %arg2[%c12, %c0_105, %c0_106] : memref<16x8x128xbf16, #tpu.memory_space<vmem>>, vector<1x8x128xbf16>
    %380 = vector.shape_cast %379 : vector<1x8x128xbf16> to vector<8x128xbf16>
    %381 = arith.extf %380 : vector<8x128xbf16> to vector<8x128xf32>
    %cst_107 = arith.constant dense<0.000000e+00> : vector<8x128xf32>
    %382 = tpu.matmul %378, %3, %cst_107 {dimension_numbers = #tpu.dot_dimension_numbers<[1], [0], [0], [1], [0, 0, 1, 1], [], []>} : vector<8x128xbf16>, vector<128x128xbf16>, vector<8x128xf32> -> vector<8x128xf32>
    %383 = arith.addf %381, %382 : vector<8x128xf32>
    %384 = arith.negf %383 : vector<8x128xf32>
    %385 = math.exp %384 : vector<8x128xf32>
    %cst_108 = arith.constant 1.000000e+00 : f32
    %386 = vector.broadcast %cst_108 : f32 to vector<8x128xf32>
    %387 = arith.addf %386, %385 : vector<8x128xf32>
    %388 = arith.divf %386, %387 : vector<8x128xf32>
    %389 = math.tanh %383 : vector<8x128xf32>
    %390 = vector.extract_strided_slice %388 {offsets = [0, 0], sizes = [8, 32], strides = [1, 1]} : vector<8x128xf32> to vector<8x32xf32>
    %391 = vector.extract_strided_slice %388 {offsets = [0, 32], sizes = [8, 32], strides = [1, 1]} : vector<8x128xf32> to vector<8x32xf32>
    %392 = vector.extract_strided_slice %388 {offsets = [0, 64], sizes = [8, 32], strides = [1, 1]} : vector<8x128xf32> to vector<8x32xf32>
    %393 = vector.extract_strided_slice %389 {offsets = [0, 96], sizes = [8, 32], strides = [1, 1]} : vector<8x128xf32> to vector<8x32xf32>
    %394 = arith.mulf %391, %372 : vector<8x32xf32>
    %395 = arith.mulf %390, %393 : vector<8x32xf32>
    %396 = arith.addf %394, %395 : vector<8x32xf32>
    %397 = math.tanh %396 : vector<8x32xf32>
    %398 = arith.mulf %392, %397 : vector<8x32xf32>
    %399 = tpu.concatenate %398, %5 in 1 : vector<8x32xf32>, vector<8x96xf32> -> vector<8x128xf32>
    %c32_i32_109 = arith.constant 32 : i32
    %400 = tpu.dynamic_rotate %399 by %c32_i32_109 dim 1 : vector<8x128xf32>, i32 -> vector<8x128xf32>
    %401 = arith.addf %399, %400 : vector<8x128xf32>
    %c64_i32_110 = arith.constant 64 : i32
    %402 = tpu.dynamic_rotate %401 by %c64_i32_110 dim 1 : vector<8x128xf32>, i32 -> vector<8x128xf32>
    %403 = arith.addf %401, %402 : vector<8x128xf32>
    %404 = arith.select %6, %396, %372 : vector<8x32xf32>
    %405 = arith.select %6, %403, %373 : vector<8x128xf32>
    %c0_111 = arith.constant 0 : index
    %c0_112 = arith.constant 0 : index
    %c384 = arith.constant 384 : index
    %406 = vector.load %arg5[%c0_111, %c0_112, %c384] : memref<1x8x512xf32, #tpu.memory_space<vmem>>, vector<1x8x32xf32>
    %407 = vector.shape_cast %406 : vector<1x8x32xf32> to vector<8x32xf32>
    %408 = vector.shape_cast %398 : vector<8x32xf32> to vector<1x8x32xf32>
    tpu.vector_store %arg5[%c0_111, %c0_112, %c384], %408 {strides = array<i32>} : memref<1x8x512xf32, #tpu.memory_space<vmem>>, vector<1x8x32xf32>,
    %409 = arith.mulf %405, %4 : vector<8x128xf32>
    %410 = arith.truncf %409 : vector<8x128xf32> to vector<8x128xbf16>
    %c13 = arith.constant 13 : index
    %c0_113 = arith.constant 0 : index
    %c0_114 = arith.constant 0 : index
    %411 = vector.load %arg2[%c13, %c0_113, %c0_114] : memref<16x8x128xbf16, #tpu.memory_space<vmem>>, vector<1x8x128xbf16>
    %412 = vector.shape_cast %411 : vector<1x8x128xbf16> to vector<8x128xbf16>
    %413 = arith.extf %412 : vector<8x128xbf16> to vector<8x128xf32>
    %cst_115 = arith.constant dense<0.000000e+00> : vector<8x128xf32>
    %414 = tpu.matmul %410, %3, %cst_115 {dimension_numbers = #tpu.dot_dimension_numbers<[1], [0], [0], [1], [0, 0, 1, 1], [], []>} : vector<8x128xbf16>, vector<128x128xbf16>, vector<8x128xf32> -> vector<8x128xf32>
    %415 = arith.addf %413, %414 : vector<8x128xf32>
    %416 = arith.negf %415 : vector<8x128xf32>
    %417 = math.exp %416 : vector<8x128xf32>
    %cst_116 = arith.constant 1.000000e+00 : f32
    %418 = vector.broadcast %cst_116 : f32 to vector<8x128xf32>
    %419 = arith.addf %418, %417 : vector<8x128xf32>
    %420 = arith.divf %418, %419 : vector<8x128xf32>
    %421 = math.tanh %415 : vector<8x128xf32>
    %422 = vector.extract_strided_slice %420 {offsets = [0, 0], sizes = [8, 32], strides = [1, 1]} : vector<8x128xf32> to vector<8x32xf32>
    %423 = vector.extract_strided_slice %420 {offsets = [0, 32], sizes = [8, 32], strides = [1, 1]} : vector<8x128xf32> to vector<8x32xf32>
    %424 = vector.extract_strided_slice %420 {offsets = [0, 64], sizes = [8, 32], strides = [1, 1]} : vector<8x128xf32> to vector<8x32xf32>
    %425 = vector.extract_strided_slice %421 {offsets = [0, 96], sizes = [8, 32], strides = [1, 1]} : vector<8x128xf32> to vector<8x32xf32>
    %426 = arith.mulf %423, %404 : vector<8x32xf32>
    %427 = arith.mulf %422, %425 : vector<8x32xf32>
    %428 = arith.addf %426, %427 : vector<8x32xf32>
    %429 = math.tanh %428 : vector<8x32xf32>
    %430 = arith.mulf %424, %429 : vector<8x32xf32>
    %431 = tpu.concatenate %430, %5 in 1 : vector<8x32xf32>, vector<8x96xf32> -> vector<8x128xf32>
    %c32_i32_117 = arith.constant 32 : i32
    %432 = tpu.dynamic_rotate %431 by %c32_i32_117 dim 1 : vector<8x128xf32>, i32 -> vector<8x128xf32>
    %433 = arith.addf %431, %432 : vector<8x128xf32>
    %c64_i32_118 = arith.constant 64 : i32
    %434 = tpu.dynamic_rotate %433 by %c64_i32_118 dim 1 : vector<8x128xf32>, i32 -> vector<8x128xf32>
    %435 = arith.addf %433, %434 : vector<8x128xf32>
    %436 = arith.select %6, %428, %404 : vector<8x32xf32>
    %437 = arith.select %6, %435, %405 : vector<8x128xf32>
    %c0_119 = arith.constant 0 : index
    %c0_120 = arith.constant 0 : index
    %c416 = arith.constant 416 : index
    %438 = vector.load %arg5[%c0_119, %c0_120, %c416] : memref<1x8x512xf32, #tpu.memory_space<vmem>>, vector<1x8x32xf32>
    %439 = vector.shape_cast %438 : vector<1x8x32xf32> to vector<8x32xf32>
    %440 = vector.shape_cast %430 : vector<8x32xf32> to vector<1x8x32xf32>
    tpu.vector_store %arg5[%c0_119, %c0_120, %c416], %440 {strides = array<i32>} : memref<1x8x512xf32, #tpu.memory_space<vmem>>, vector<1x8x32xf32>,
    %441 = arith.mulf %437, %4 : vector<8x128xf32>
    %442 = arith.truncf %441 : vector<8x128xf32> to vector<8x128xbf16>
    %c14 = arith.constant 14 : index
    %c0_121 = arith.constant 0 : index
    %c0_122 = arith.constant 0 : index
    %443 = vector.load %arg2[%c14, %c0_121, %c0_122] : memref<16x8x128xbf16, #tpu.memory_space<vmem>>, vector<1x8x128xbf16>
    %444 = vector.shape_cast %443 : vector<1x8x128xbf16> to vector<8x128xbf16>
    %445 = arith.extf %444 : vector<8x128xbf16> to vector<8x128xf32>
    %cst_123 = arith.constant dense<0.000000e+00> : vector<8x128xf32>
    %446 = tpu.matmul %442, %3, %cst_123 {dimension_numbers = #tpu.dot_dimension_numbers<[1], [0], [0], [1], [0, 0, 1, 1], [], []>} : vector<8x128xbf16>, vector<128x128xbf16>, vector<8x128xf32> -> vector<8x128xf32>
    %447 = arith.addf %445, %446 : vector<8x128xf32>
    %448 = arith.negf %447 : vector<8x128xf32>
    %449 = math.exp %448 : vector<8x128xf32>
    %cst_124 = arith.constant 1.000000e+00 : f32
    %450 = vector.broadcast %cst_124 : f32 to vector<8x128xf32>
    %451 = arith.addf %450, %449 : vector<8x128xf32>
    %452 = arith.divf %450, %451 : vector<8x128xf32>
    %453 = math.tanh %447 : vector<8x128xf32>
    %454 = vector.extract_strided_slice %452 {offsets = [0, 0], sizes = [8, 32], strides = [1, 1]} : vector<8x128xf32> to vector<8x32xf32>
    %455 = vector.extract_strided_slice %452 {offsets = [0, 32], sizes = [8, 32], strides = [1, 1]} : vector<8x128xf32> to vector<8x32xf32>
    %456 = vector.extract_strided_slice %452 {offsets = [0, 64], sizes = [8, 32], strides = [1, 1]} : vector<8x128xf32> to vector<8x32xf32>
    %457 = vector.extract_strided_slice %453 {offsets = [0, 96], sizes = [8, 32], strides = [1, 1]} : vector<8x128xf32> to vector<8x32xf32>
    %458 = arith.mulf %455, %436 : vector<8x32xf32>
    %459 = arith.mulf %454, %457 : vector<8x32xf32>
    %460 = arith.addf %458, %459 : vector<8x32xf32>
    %461 = math.tanh %460 : vector<8x32xf32>
    %462 = arith.mulf %456, %461 : vector<8x32xf32>
    %463 = tpu.concatenate %462, %5 in 1 : vector<8x32xf32>, vector<8x96xf32> -> vector<8x128xf32>
    %c32_i32_125 = arith.constant 32 : i32
    %464 = tpu.dynamic_rotate %463 by %c32_i32_125 dim 1 : vector<8x128xf32>, i32 -> vector<8x128xf32>
    %465 = arith.addf %463, %464 : vector<8x128xf32>
    %c64_i32_126 = arith.constant 64 : i32
    %466 = tpu.dynamic_rotate %465 by %c64_i32_126 dim 1 : vector<8x128xf32>, i32 -> vector<8x128xf32>
    %467 = arith.addf %465, %466 : vector<8x128xf32>
    %468 = arith.select %6, %460, %436 : vector<8x32xf32>
    %469 = arith.select %6, %467, %437 : vector<8x128xf32>
    %c0_127 = arith.constant 0 : index
    %c0_128 = arith.constant 0 : index
    %c448 = arith.constant 448 : index
    %470 = vector.load %arg5[%c0_127, %c0_128, %c448] : memref<1x8x512xf32, #tpu.memory_space<vmem>>, vector<1x8x32xf32>
    %471 = vector.shape_cast %470 : vector<1x8x32xf32> to vector<8x32xf32>
    %472 = vector.shape_cast %462 : vector<8x32xf32> to vector<1x8x32xf32>
    tpu.vector_store %arg5[%c0_127, %c0_128, %c448], %472 {strides = array<i32>} : memref<1x8x512xf32, #tpu.memory_space<vmem>>, vector<1x8x32xf32>,
    %473 = arith.mulf %469, %4 : vector<8x128xf32>
    %474 = arith.truncf %473 : vector<8x128xf32> to vector<8x128xbf16>
    %c15 = arith.constant 15 : index
    %c0_129 = arith.constant 0 : index
    %c0_130 = arith.constant 0 : index
    %475 = vector.load %arg2[%c15, %c0_129, %c0_130] : memref<16x8x128xbf16, #tpu.memory_space<vmem>>, vector<1x8x128xbf16>
    %476 = vector.shape_cast %475 : vector<1x8x128xbf16> to vector<8x128xbf16>
    %477 = arith.extf %476 : vector<8x128xbf16> to vector<8x128xf32>
    %cst_131 = arith.constant dense<0.000000e+00> : vector<8x128xf32>
    %478 = tpu.matmul %474, %3, %cst_131 {dimension_numbers = #tpu.dot_dimension_numbers<[1], [0], [0], [1], [0, 0, 1, 1], [], []>} : vector<8x128xbf16>, vector<128x128xbf16>, vector<8x128xf32> -> vector<8x128xf32>
    %479 = arith.addf %477, %478 : vector<8x128xf32>
    %480 = arith.negf %479 : vector<8x128xf32>
    %481 = math.exp %480 : vector<8x128xf32>
    %cst_132 = arith.constant 1.000000e+00 : f32
    %482 = vector.broadcast %cst_132 : f32 to vector<8x128xf32>
    %483 = arith.addf %482, %481 : vector<8x128xf32>
    %484 = arith.divf %482, %483 : vector<8x128xf32>
    %485 = math.tanh %479 : vector<8x128xf32>
    %486 = vector.extract_strided_slice %484 {offsets = [0, 0], sizes = [8, 32], strides = [1, 1]} : vector<8x128xf32> to vector<8x32xf32>
    %487 = vector.extract_strided_slice %484 {offsets = [0, 32], sizes = [8, 32], strides = [1, 1]} : vector<8x128xf32> to vector<8x32xf32>
    %488 = vector.extract_strided_slice %484 {offsets = [0, 64], sizes = [8, 32], strides = [1, 1]} : vector<8x128xf32> to vector<8x32xf32>
    %489 = vector.extract_strided_slice %485 {offsets = [0, 96], sizes = [8, 32], strides = [1, 1]} : vector<8x128xf32> to vector<8x32xf32>
    %490 = arith.mulf %487, %468 : vector<8x32xf32>
    %491 = arith.mulf %486, %489 : vector<8x32xf32>
    %492 = arith.addf %490, %491 : vector<8x32xf32>
    %493 = math.tanh %492 : vector<8x32xf32>
    %494 = arith.mulf %488, %493 : vector<8x32xf32>
    %495 = tpu.concatenate %494, %5 in 1 : vector<8x32xf32>, vector<8x96xf32> -> vector<8x128xf32>
    %c32_i32_133 = arith.constant 32 : i32
    %496 = tpu.dynamic_rotate %495 by %c32_i32_133 dim 1 : vector<8x128xf32>, i32 -> vector<8x128xf32>
    %497 = arith.addf %495, %496 : vector<8x128xf32>
    %c64_i32_134 = arith.constant 64 : i32
    %498 = tpu.dynamic_rotate %497 by %c64_i32_134 dim 1 : vector<8x128xf32>, i32 -> vector<8x128xf32>
    %499 = arith.addf %497, %498 : vector<8x128xf32>
    %500 = arith.select %6, %492, %468 : vector<8x32xf32>
    %501 = arith.select %6, %499, %469 : vector<8x128xf32>
    %c0_135 = arith.constant 0 : index
    %c0_136 = arith.constant 0 : index
    %c480 = arith.constant 480 : index
    %502 = vector.load %arg5[%c0_135, %c0_136, %c480] : memref<1x8x512xf32, #tpu.memory_space<vmem>>, vector<1x8x32xf32>
    %503 = vector.shape_cast %502 : vector<1x8x32xf32> to vector<8x32xf32>
    %504 = vector.shape_cast %494 : vector<8x32xf32> to vector<1x8x32xf32>
    tpu.vector_store %arg5[%c0_135, %c0_136, %c480], %504 {strides = array<i32>} : memref<1x8x512xf32, #tpu.memory_space<vmem>>, vector<1x8x32xf32>,
    %c0_137 = arith.constant 0 : index
    %c0_138 = arith.constant 0 : index
    %505 = vector.load %arg8[%c0_137, %c0_138] : memref<8x128xf32, #tpu.memory_space<vmem>>, vector<8x128xf32>
    tpu.vector_store %arg8[%c0_137, %c0_138], %501 {strides = array<i32>} : memref<8x128xf32, #tpu.memory_space<vmem>>, vector<8x128xf32>,
    %c0_139 = arith.constant 0 : index
    %c0_140 = arith.constant 0 : index
    %506 = vector.load %arg9[%c0_139, %c0_140] : memref<8x32xf32, #tpu.memory_space<vmem>>, vector<8x32xf32>
    tpu.vector_store %arg9[%c0_139, %c0_140], %500 {strides = array<i32>} : memref<8x32xf32, #tpu.memory_space<vmem>>, vector<8x32xf32>,
    %c0_i32_141 = arith.constant 0 : i32
    %507 = arith.cmpi eq, %arg1, %c0_i32_141 : i32
    %508 = arith.extui %507 : i1 to i32
    %c0_i32_142 = arith.constant 0 : i32
    %509 = arith.cmpi ne, %508, %c0_i32_142 : i32
    scf.if %509 {
      %510 = vector.extract_strided_slice %501 {offsets = [0, 0], sizes = [8, 32], strides = [1, 1]} : vector<8x128xf32> to vector<8x32xf32>
      %c0_143 = arith.constant 0 : index
      %c0_144 = arith.constant 0 : index
      %511 = vector.load %arg6[%c0_143, %c0_144] : memref<8x32xf32, #tpu.memory_space<vmem>>, vector<8x32xf32>
      tpu.vector_store %arg6[%c0_143, %c0_144], %510 {strides = array<i32>} : memref<8x32xf32, #tpu.memory_space<vmem>>, vector<8x32xf32>,
      %c0_145 = arith.constant 0 : index
      %c0_146 = arith.constant 0 : index
      %512 = vector.load %arg7[%c0_145, %c0_146] : memref<8x32xf32, #tpu.memory_space<vmem>>, vector<8x32xf32>
      tpu.vector_store %arg7[%c0_145, %c0_146], %500 {strides = array<i32>} : memref<8x32xf32, #tpu.memory_space<vmem>>, vector<8x32xf32>,
    } else {
    }
    return
  }
  func.func @transform_0(%arg0: i32, %arg1: i32) -> (i32, i32, i32) {
    %c0_i32 = arith.constant 0 : i32
    %c0_i32_0 = arith.constant 0 : i32
    return %arg1, %arg0, %c0_i32 : i32, i32, i32
  }
  func.func @transform_1(%arg0: i32, %arg1: i32) -> (i32, i32) {
    %c0_i32 = arith.constant 0 : i32
    %c0_i32_0 = arith.constant 0 : i32
    %c0_i32_1 = arith.constant 0 : i32
    return %c0_i32, %c0_i32_0 : i32, i32
  }
  func.func @transform_2(%arg0: i32, %arg1: i32) -> (i32, i32) {
    %c0_i32 = arith.constant 0 : i32
    %c0_i32_0 = arith.constant 0 : i32
    return %arg0, %c0_i32 : i32, i32
  }
  func.func @transform_3(%arg0: i32, %arg1: i32) -> (i32, i32, i32) {
    %c0_i32 = arith.constant 0 : i32
    %c0_i32_0 = arith.constant 0 : i32
    return %arg1, %arg0, %c0_i32 : i32, i32, i32
  }
  func.func @transform_4(%arg0: i32, %arg1: i32) -> (i32, i32) {
    %c0_i32 = arith.constant 0 : i32
    %c0_i32_0 = arith.constant 0 : i32
    return %arg0, %c0_i32 : i32, i32
  }
  func.func @transform_5(%arg0: i32, %arg1: i32) -> (i32, i32) {
    %c0_i32 = arith.constant 0 : i32
    %c0_i32_0 = arith.constant 0 : i32
    return %arg0, %c0_i32 : i32, i32
  }
}

</mosaic_0001>

<llo_original>
// kernel: tpu_custom_call.1
$region0: #{tpu_custom_call.1}
  #allocation0 [shape = 'u32[]', space=smem, size = 0x4, offset = 0x4, fixed_abs, tag = 'smem constant byte address 0x4 - core index']
  #allocation1 [shape = 'u32[144,128]{1,0:T(1,128)}', space=vmem, size = 0x12000, scoped, tag = 'internal scratch']
  #allocation2 [shape = 'f32[8,128]{1,0:T(8,128)}', space=vmem, size = 0x1000, scoped, tag = 'scratch operand']
  #allocation3 [shape = 'f32[8,32]{1,0:T(8,128)}', space=vmem, size = 0x1000, scoped, tag = 'scratch operand']
  %s0 = inlined_call_operand.hbm [shape: bf16[16,8,128], index: 0, kind: input, shape index: {}]
  %s1 = inlined_call_operand.hbm [shape: bf16[128,128], index: 1, kind: input, shape index: {}]
  %s2 = inlined_call_operand.hbm [shape: f32[8,128], index: 2, kind: input, shape index: {}]
  %s3 = inlined_call_operand.hbm [shape: f32[1,8,512], index: 3, kind: output, shape index: {0}]
  %s4 = inlined_call_operand.hbm [shape: f32[8,32], index: 4, kind: output, shape index: {1}]
  %s5 = inlined_call_operand.hbm [shape: f32[8,32], index: 5, kind: output, shape index: {2}]
  %6 = xla_tuple %s3, %s4, %s5
  %s7 = sld [smem:[#allocation0]]
  $region58: #{tpu_custom_call.1} parent=0
    _
  %s9 = ssub.s32 1, %s7
  %s10 = scalar_select 0, %s9, %s7
  $region1: #{tpu_custom_call.1} parent=0
    #allocation4 [shape = 'u8[32768]{0}', space=vmem, size = 0x8000, scoped, tag = 'input window, operand 0, single buffered']
    #allocation5 [shape = 's32[1]{0}', space=sflag, size = 0x4, scoped, tag = 'scoped memory for tpu_custom_call.1']
    #allocation6 [shape = 's32[1]{0}', space=sflag, size = 0x4, scoped, tag = 'scoped memory for tpu_custom_call.1']
    #allocation7 [shape = 'u8[32768]{0}', space=vmem, size = 0x8000, scoped, tag = 'input window, operand 1, single buffered']
    #allocation8 [shape = 's32[1]{0}', space=sflag, size = 0x4, scoped, tag = 'scoped memory for tpu_custom_call.1']
    #allocation9 [shape = 'u8[4096]{0}', space=vmem, size = 0x1000, scoped, tag = 'input window, operand 2, single buffered']
    #allocation10 [shape = 'u8[16384]{0}', space=vmem, size = 0x4000, scoped, tag = 'output window, operand 0, single buffered']
    #allocation11 [shape = 'u8[4096]{0}', space=vmem, size = 0x1000, scoped, tag = 'output window, operand 1, single buffered']
    #allocation12 [shape = 's32[1]{0}', space=sflag, size = 0x4, scoped, tag = 'scoped memory for tpu_custom_call.1']
    #allocation13 [shape = 'u8[4096]{0}', space=vmem, size = 0x1000, scoped, tag = 'output window, operand 2, single buffered']
    %11 = vsyncpa [#allocation5], 0
    %12 = vsyncpa [#allocation8], 0
    %13 = vsyncpa [#allocation6], 0
    %14 = vsyncpa [#allocation12], 0
    // Predicated region
    $region2: #{tpu_custom_call.1} parent=1 // pred_check
      _
    $region3: #{tpu_custom_call.1} parent=1 // pred_check_branch
      %16 = sbr.rel (0) target = $region5
    $region4: #{tpu_custom_call.1} parent=1 // pred_region
      %s18 = ssub.s32 1024, 1024
      %19 = vsyncadd [#allocation5], %s18
      %s20 = sshll.u32 [#allocation4], 4
      %s21 = int_to_ptr.vmem [resolvable:$true] %s20
      %26 = dma.hbm_to_vmem [thread:$0]  %s0, 1024, %s21, [#allocation5], 64, 64, 4
    $region5: #{tpu_custom_call.1} parent=1 // pred_fallthru
      _
    // Predicated region
    $region6: #{tpu_custom_call.1} parent=1 // pred_check
      _
    $region7: #{tpu_custom_call.1} parent=1 // pred_check_branch
      %28 = sbr.rel (0) target = $region9
    $region8: #{tpu_custom_call.1} parent=1 // pred_region
      %s30 = ssub.s32 1024, 1024
      %31 = vsyncadd [#allocation8], %s30
      %s32 = sshll.u32 [#allocation7], 4
      %s33 = int_to_ptr.vmem [resolvable:$true] %s32
      %38 = dma.hbm_to_vmem [thread:$0]  %s1, 1024, %s33, [#allocation8], 64, 64, 4
    $region9: #{tpu_custom_call.1} parent=1 // pred_fallthru
      _
    // Predicated region
    $region10: #{tpu_custom_call.1} parent=1 // pred_check
      _
    $region11: #{tpu_custom_call.1} parent=1 // pred_check_branch
      %40 = sbr.rel (0) target = $region13
    $region12: #{tpu_custom_call.1} parent=1 // pred_region
      %s42 = ssub.s32 128, 128
      %43 = vsyncadd [#allocation8], %s42
      %s45 = sshll.u32 [#allocation9], 4
      %s46 = int_to_ptr.vmem [resolvable:$true] %s45
      %48 = dma.hbm_to_vmem [thread:$0]  %s2, 128, %s46, [#allocation8]
    $region13: #{tpu_custom_call.1} parent=1 // pred_fallthru
      _
    // Predicated region
    $region14: #{tpu_custom_call.1} parent=1 // pred_check
      _
    $region15: #{tpu_custom_call.1} parent=1 // pred_check_branch
      %50 = sbr.rel (0) target = $region17
    $region16: #{tpu_custom_call.1} parent=1 // pred_region
      %51 = dma.done [#allocation5], 1024
    $region17: #{tpu_custom_call.1} parent=1 // pred_fallthru
      _
    // Predicated region
    $region18: #{tpu_custom_call.1} parent=1 // pred_check
      _
    $region19: #{tpu_custom_call.1} parent=1 // pred_check_branch
      %53 = sbr.rel (0) target = $region21
    $region20: #{tpu_custom_call.1} parent=1 // pred_region
      %54 = dma.done [#allocation8], 1024
    $region21: #{tpu_custom_call.1} parent=1 // pred_fallthru
      _
    // Predicated region
    $region22: #{tpu_custom_call.1} parent=1 // pred_check
      _
    $region23: #{tpu_custom_call.1} parent=1 // pred_check_branch
      %56 = sbr.rel (0) target = $region25
    $region24: #{tpu_custom_call.1} parent=1 // pred_region
      %57 = dma.done [#allocation8], 128
    $region25: #{tpu_custom_call.1} parent=1 // pred_fallthru
      _
    %p59 = scmp.eq.s32.totalorder 0, 0
    // Predicated region
    $region26: #{tpu_custom_call.1} parent=1 // pred_check
      %p60 = pneg %p59
    $region27: #{tpu_custom_call.1} parent=1 // pred_check_branch
      %62 = sbr.rel (%p60) target = $region29
    $region28: #{tpu_custom_call.1} parent=1 // pred_region
      %63 = vst [vmem:[#allocation2] sm:$0xff] 0.0
      %vm64 = vcmask 261120
      %65 = vst.msk [vmem:[#allocation3] sm:$0xff] %vm64, 0.0
    $region29: #{tpu_custom_call.1} parent=1 // pred_fallthru
      _
    %v66 = vld [vmem:[#allocation7] sm:$0xf]
    %v67 = vld [vmem:[#allocation7 + $0x4] sm:$0xf]
    %v68 = vld [vmem:[#allocation7 + $0x8] sm:$0xf]
    %v69 = vld [vmem:[#allocation7 + $0xc] sm:$0xf]
    %v70 = vld [vmem:[#allocation7 + $0x10] sm:$0xf]
    %v71 = vld [vmem:[#allocation7 + $0x14] sm:$0xf]
    %v72 = vld [vmem:[#allocation7 + $0x18] sm:$0xf]
    %v73 = vld [vmem:[#allocation7 + $0x1c] sm:$0xf]
    %v74 = vld [vmem:[#allocation7 + $0x20] sm:$0xf]
    %v75 = vld [vmem:[#allocation7 + $0x24] sm:$0xf]
    %v76 = vld [vmem:[#allocation7 + $0x28] sm:$0xf]
    %v77 = vld [vmem:[#allocation7 + $0x2c] sm:$0xf]
    %v78 = vld [vmem:[#allocation7 + $0x30] sm:$0xf]
    %v79 = vld [vmem:[#allocation7 + $0x34] sm:$0xf]
    %v80 = vld [vmem:[#allocation7 + $0x38] sm:$0xf]
    %v81 = vld [vmem:[#allocation7 + $0x3c] sm:$0xf]
    %v82 = vld [vmem:[#allocation9] sm:$0xff]
    %p83 = scmp.ne.s32.totalorder 0, 0
    %v84 = vld [vmem:[#allocation2] sm:$0xff]
    %v85 = vld [vmem:[#allocation3] sm:$0xff]
    %v86 = vmul.f32 %v84, %v82
    %v87 = vpack.c.bf16 %v86, %v86
    %v88 = vld [vmem:[#allocation4] sm:$0xf]
    %v89 = vunpack.c.l.bf16 %v88
    %v106 = vunpack.c.l.b16 %v66
    %v107 = vunpack.c.l.b16 %v67
    %v108 = vunpack.c.l.b16 %v68
    %v109 = vunpack.c.l.b16 %v69
    %v110 = vunpack.c.l.b16 %v70
    %v111 = vunpack.c.l.b16 %v71
    %v112 = vunpack.c.l.b16 %v72
    %v113 = vunpack.c.l.b16 %v73
    %v114 = vunpack.c.l.b16 %v74
    %v115 = vunpack.c.l.b16 %v75
    %v116 = vunpack.c.l.b16 %v76
    %v117 = vunpack.c.l.b16 %v77
    %v118 = vunpack.c.l.b16 %v78
    %v119 = vunpack.c.l.b16 %v79
    %v120 = vunpack.c.l.b16 %v80
    %v121 = vunpack.c.l.b16 %v81
    %v122 = vpack.c.b16 %v107, %v106
    %v123 = vpack.c.b16 %v109, %v108
    %v124 = vpack.c.b16 %v111, %v110
    %v125 = vpack.c.b16 %v113, %v112
    %v126 = vpack.c.b16 %v115, %v114
    %v127 = vpack.c.b16 %v117, %v116
    %v128 = vpack.c.b16 %v119, %v118
    %v129 = vpack.c.b16 %v121, %v120
    %138 = vmatprep.subr.bf16.mxu0 0
    %139 = vmatpush1.bf16.msra.mxu0 %v122
    %140 = vmatprep.subr.bf16.mxu0 0
    %141 = vmatpush1.bf16.msra.mxu0 %v123
    %142 = vmatprep.subr.bf16.mxu0 0
    %143 = vmatpush1.bf16.msra.mxu0 %v124
    %144 = vmatprep.subr.bf16.mxu0 0
    %145 = vmatpush1.bf16.msra.mxu0 %v125
    %146 = vmatprep.subr.bf16.mxu0 0
    %147 = vmatpush1.bf16.msra.mxu0 %v126
    %148 = vmatprep.subr.bf16.mxu0 0
    %149 = vmatpush1.bf16.msra.mxu0 %v127
    %150 = vmatprep.subr.bf16.mxu0 0
    %151 = vmatpush1.bf16.msra.mxu0 %v128
    %152 = vmatprep.subr.bf16.mxu0 0
    %153 = vmatpush1.bf16.msra.mxu0 %v129
    %154 = vmatprep.subr.bf16.mxu0 0
    %155 = vmatpush1.bf16.msra.mxu0 0
    %156 = vmatprep.subr.bf16.mxu0 0
    %157 = vmatpush1.bf16.msra.mxu0 0
    %158 = vmatprep.subr.bf16.mxu0 0
    %159 = vmatpush1.bf16.msra.mxu0 0
    %160 = vmatprep.subr.bf16.mxu0 0
    %161 = vmatpush1.bf16.msra.mxu0 0
    %162 = vmatprep.subr.bf16.mxu0 0
    %163 = vmatpush1.bf16.msra.mxu0 0
    %164 = vmatprep.subr.bf16.mxu0 0
    %165 = vmatpush1.bf16.msra.mxu0 0
    %166 = vmatprep.subr.bf16.mxu0 0
    %167 = vmatpush1.bf16.msra.mxu0 0
    %168 = vmatprep.subr.bf16.mxu0 0
    %169 = vmatpush1.bf16.msra.mxu0 0
    %170 = vmatprep.mubr.bf16.mxu0 0
    %171 = vmatmul.mubr.bf16.gmra.mrb[0].mxu0 %v87
    %v172 = vpop.f32.mrb[0].mxu0
    %v173 = vadd.f32 0.0, %v172
    %v174 = vpop.f32.mrb[0].mxu0
    %v175 = vpop.f32.mrb[0].mxu0
    %v176 = vpop.f32.mrb[0].mxu0
    %177 = vdwg.mxu0
    %v178 = vadd.f32 %v89, %v173
    %v179 = vxor.u32 %v178, 2147483648
    %v180 = vmul.f32 %v179, 1.442695
    %v181 = vpow.pop %v180
    %v182 = vadd.f32 %v181, 1.0
    %v183 = vrcp.pop %v182
    %v184 = vmul.f32 1.0, %v183
    %v185 = vtanh.pop %v178
    %187 = vrot.lane.b32.xlu0 %v85, 32
    %v188 = vpop.permute.xlu0 %187
    %v190 = vmul.f32 %v184, %v188
    %192 = vrot.lane.b32.xlu0 %v185, 32
    %v193 = vpop.permute.xlu0 %192
    %v195 = vmul.f32 %v184, %v193
    %197 = vrot.lane.b32.xlu0 %v195, 32
    %v198 = vpop.permute.xlu0 %197
    %v200 = vadd.f32 %v190, %v198
    %v201 = vtanh.pop %v200
    %203 = vrot.lane.b32.xlu0 %v201, 32
    %v204 = vpop.permute.xlu0 %203
    %v206 = vmul.f32 %v184, %v204
    %208 = vrot.lane.b32.xlu0 %v206, 64
    %v209 = vpop.permute.xlu0 %208
    %vm211 = vcmask 261120
    %v212 = vsel %vm211, %v209, 0.0
    %213 = vrot.lane.b32.xlu0 %v212, 32
    %v214 = vpop.permute.xlu0 %213
    %v215 = vadd.f32 %v212, %v214
    %216 = vrot.lane.b32.xlu0 %v215, 64
    %v217 = vpop.permute.xlu0 %216
    %v218 = vadd.f32 %v215, %v217
    %219 = vst.msk [vmem:[#allocation10] sm:$0xff] %vm211, %v209
    %v220 = vmul.f32 %v218, %v82
    %v221 = vpack.c.bf16 %v220, %v220
    %s222 = scalar_lea.vmem [#allocation4], 4
    %v223 = vld [vmem:[%s222] sm:$0xf]
    %v224 = vunpack.c.l.bf16 %v223
    %225 = vmatprep.subr.bf16.mxu0 0
    %226 = vmatpush1.bf16.msra.mxu0 %v122
    %227 = vmatprep.subr.bf16.mxu0 0
    %228 = vmatpush1.bf16.msra.mxu0 %v123
    %229 = vmatprep.subr.bf16.mxu0 0
    %230 = vmatpush1.bf16.msra.mxu0 %v124
    %231 = vmatprep.subr.bf16.mxu0 0
    %232 = vmatpush1.bf16.msra.mxu0 %v125
    %233 = vmatprep.subr.bf16.mxu0 0
    %234 = vmatpush1.bf16.msra.mxu0 %v126
    %235 = vmatprep.subr.bf16.mxu0 0
    %236 = vmatpush1.bf16.msra.mxu0 %v127
    %237 = vmatprep.subr.bf16.mxu0 0
    %238 = vmatpush1.bf16.msra.mxu0 %v128
    %239 = vmatprep.subr.bf16.mxu0 0
    %240 = vmatpush1.bf16.msra.mxu0 %v129
    %241 = vmatprep.subr.bf16.mxu0 0
    %242 = vmatpush1.bf16.msra.mxu0 0
    %243 = vmatprep.subr.bf16.mxu0 0
    %244 = vmatpush1.bf16.msra.mxu0 0
    %245 = vmatprep.subr.bf16.mxu0 0
    %246 = vmatpush1.bf16.msra.mxu0 0
    %247 = vmatprep.subr.bf16.mxu0 0
    %248 = vmatpush1.bf16.msra.mxu0 0
    %249 = vmatprep.subr.bf16.mxu0 0
    %250 = vmatpush1.bf16.msra.mxu0 0
    %251 = vmatprep.subr.bf16.mxu0 0
    %252 = vmatpush1.bf16.msra.mxu0 0
    %253 = vmatprep.subr.bf16.mxu0 0
    %254 = vmatpush1.bf16.msra.mxu0 0
    %255 = vmatprep.subr.bf16.mxu0 0
    %256 = vmatpush1.bf16.msra.mxu0 0
    %257 = vmatprep.mubr.bf16.mxu0 0
    %258 = vmatmul.mubr.bf16.gmra.mrb[0].mxu0 %v221
    %v259 = vpop.f32.mrb[0].mxu0
    %v260 = vadd.f32 0.0, %v259
    %v261 = vpop.f32.mrb[0].mxu0
    %v262 = vpop.f32.mrb[0].mxu0
    %v263 = vpop.f32.mrb[0].mxu0
    %264 = vdwg.mxu0
    %v265 = vadd.f32 %v224, %v260
    %v266 = vxor.u32 %v265, 2147483648
    %v267 = vmul.f32 %v266, 1.442695
    %v268 = vpow.pop %v267
    %v269 = vadd.f32 %v268, 1.0
    %v270 = vrcp.pop %v269
    %v271 = vmul.f32 1.0, %v270
    %v272 = vtanh.pop %v265
    %v273 = vmul.f32 %v271, %v200
    %275 = vrot.lane.b32.xlu0 %v272, 32
    %v276 = vpop.permute.xlu0 %275
    %v278 = vmul.f32 %v271, %v276
    %280 = vrot.lane.b32.xlu0 %v278, 32
    %v281 = vpop.permute.xlu0 %280
    %v283 = vadd.f32 %v273, %v281
    %v284 = vtanh.pop %v283
    %286 = vrot.lane.b32.xlu0 %v284, 32
    %v287 = vpop.permute.xlu0 %286
    %v289 = vmul.f32 %v271, %v287
    %291 = vrot.lane.b32.xlu0 %v289, 64
    %v292 = vpop.permute.xlu0 %291
    %v294 = vsel %vm211, %v292, 0.0
    %295 = vrot.lane.b32.xlu0 %v294, 32
    %v296 = vpop.permute.xlu0 %295
    %v297 = vadd.f32 %v294, %v296
    %298 = vrot.lane.b32.xlu0 %v297, 64
    %v299 = vpop.permute.xlu0 %298
    %v300 = vadd.f32 %v297, %v299
    %301 = vrot.lane.b32.xlu0 %v289, 96
    %v302 = vpop.permute.xlu0 %301
    %vm304 = vcmask 523520
    %305 = vst.msk [vmem:[#allocation10] sm:$0xff] %vm304, %v302
    %v306 = vmul.f32 %v300, %v82
    %v307 = vpack.c.bf16 %v306, %v306
    %s308 = scalar_lea.vmem [#allocation4], 8
    %v309 = vld [vmem:[%s308] sm:$0xf]
    %v310 = vunpack.c.l.bf16 %v309
    %311 = vmatprep.subr.bf16.mxu0 0
    %312 = vmatpush1.bf16.msra.mxu0 %v122
    %313 = vmatprep.subr.bf16.mxu0 0
    %314 = vmatpush1.bf16.msra.mxu0 %v123
    %315 = vmatprep.subr.bf16.mxu0 0
    %316 = vmatpush1.bf16.msra.mxu0 %v124
    %317 = vmatprep.subr.bf16.mxu0 0
    %318 = vmatpush1.bf16.msra.mxu0 %v125
    %319 = vmatprep.subr.bf16.mxu0 0
    %320 = vmatpush1.bf16.msra.mxu0 %v126
    %321 = vmatprep.subr.bf16.mxu0 0
    %322 = vmatpush1.bf16.msra.mxu0 %v127
    %323 = vmatprep.subr.bf16.mxu0 0
    %324 = vmatpush1.bf16.msra.mxu0 %v128
    %325 = vmatprep.subr.bf16.mxu0 0
    %326 = vmatpush1.bf16.msra.mxu0 %v129
    %327 = vmatprep.subr.bf16.mxu0 0
    %328 = vmatpush1.bf16.msra.mxu0 0
    %329 = vmatprep.subr.bf16.mxu0 0
    %330 = vmatpush1.bf16.msra.mxu0 0
    %331 = vmatprep.subr.bf16.mxu0 0
    %332 = vmatpush1.bf16.msra.mxu0 0
    %333 = vmatprep.subr.bf16.mxu0 0
    %334 = vmatpush1.bf16.msra.mxu0 0
    %335 = vmatprep.subr.bf16.mxu0 0
    %336 = vmatpush1.bf16.msra.mxu0 0
    %337 = vmatprep.subr.bf16.mxu0 0
    %338 = vmatpush1.bf16.msra.mxu0 0
    %339 = vmatprep.subr.bf16.mxu0 0
    %340 = vmatpush1.bf16.msra.mxu0 0
    %341 = vmatprep.subr.bf16.mxu0 0
    %342 = vmatpush1.bf16.msra.mxu0 0
    %343 = vmatprep.mubr.bf16.mxu0 0
    %344 = vmatmul.mubr.bf16.gmra.mrb[0].mxu0 %v307
    %v345 = vpop.f32.mrb[0].mxu0
    %v346 = vadd.f32 0.0, %v345
    %v347 = vpop.f32.mrb[0].mxu0
    %v348 = vpop.f32.mrb[0].mxu0
    %v349 = vpop.f32.mrb[0].mxu0
    %350 = vdwg.mxu0
    %v351 = vadd.f32 %v310, %v346
    %v352 = vxor.u32 %v351, 2147483648
    %v353 = vmul.f32 %v352, 1.442695
    %v354 = vpow.pop %v353
    %v355 = vadd.f32 %v354, 1.0
    %v356 = vrcp.pop %v355
    %v357 = vmul.f32 1.0, %v356
    %v358 = vtanh.pop %v351
    %v359 = vmul.f32 %v357, %v283
    %361 = vrot.lane.b32.xlu0 %v358, 32
    %v362 = vpop.permute.xlu0 %361
    %v364 = vmul.f32 %v357, %v362
    %366 = vrot.lane.b32.xlu0 %v364, 32
    %v367 = vpop.permute.xlu0 %366
    %v369 = vadd.f32 %v359, %v367
    %v370 = vtanh.pop %v369
    %372 = vrot.lane.b32.xlu0 %v370, 32
    %v373 = vpop.permute.xlu0 %372
    %v375 = vmul.f32 %v357, %v373
    %377 = vrot.lane.b32.xlu0 %v375, 64
    %v378 = vpop.permute.xlu0 %377
    %v380 = vsel %vm211, %v378, 0.0
    %381 = vrot.lane.b32.xlu0 %v380, 32
    %v382 = vpop.permute.xlu0 %381
    %v383 = vadd.f32 %v380, %v382
    %384 = vrot.lane.b32.xlu0 %v383, 64
    %v385 = vpop.permute.xlu0 %384
    %v386 = vadd.f32 %v383, %v385
    %vm387 = vcmask 785920
    %388 = vst.msk [vmem:[#allocation10] sm:$0xff] %vm387, %v375
    %v389 = vmul.f32 %v386, %v82
    %v390 = vpack.c.bf16 %v389, %v389
    %s391 = scalar_lea.vmem [#allocation4], 12
    %v392 = vld [vmem:[%s391] sm:$0xf]
    %v393 = vunpack.c.l.bf16 %v392
    %394 = vmatprep.subr.bf16.mxu0 0
    %395 = vmatpush1.bf16.msra.mxu0 %v122
    %396 = vmatprep.subr.bf16.mxu0 0
    %397 = vmatpush1.bf16.msra.mxu0 %v123
    %398 = vmatprep.subr.bf16.mxu0 0
    %399 = vmatpush1.bf16.msra.mxu0 %v124
    %400 = vmatprep.subr.bf16.mxu0 0
    %401 = vmatpush1.bf16.msra.mxu0 %v125
    %402 = vmatprep.subr.bf16.mxu0 0
    %403 = vmatpush1.bf16.msra.mxu0 %v126
    %404 = vmatprep.subr.bf16.mxu0 0
    %405 = vmatpush1.bf16.msra.mxu0 %v127
    %406 = vmatprep.subr.bf16.mxu0 0
    %407 = vmatpush1.bf16.msra.mxu0 %v128
    %408 = vmatprep.subr.bf16.mxu0 0
    %409 = vmatpush1.bf16.msra.mxu0 %v129
    %410 = vmatprep.subr.bf16.mxu0 0
    %411 = vmatpush1.bf16.msra.mxu0 0
    %412 = vmatprep.subr.bf16.mxu0 0
    %413 = vmatpush1.bf16.msra.mxu0 0
    %414 = vmatprep.subr.bf16.mxu0 0
    %415 = vmatpush1.bf16.msra.mxu0 0
    %416 = vmatprep.subr.bf16.mxu0 0
    %417 = vmatpush1.bf16.msra.mxu0 0
    %418 = vmatprep.subr.bf16.mxu0 0
    %419 = vmatpush1.bf16.msra.mxu0 0
    %420 = vmatprep.subr.bf16.mxu0 0
    %421 = vmatpush1.bf16.msra.mxu0 0
    %422 = vmatprep.subr.bf16.mxu0 0
    %423 = vmatpush1.bf16.msra.mxu0 0
    %424 = vmatprep.subr.bf16.mxu0 0
    %425 = vmatpush1.bf16.msra.mxu0 0
    %426 = vmatprep.mubr.bf16.mxu0 0
    %427 = vmatmul.mubr.bf16.gmra.mrb[0].mxu0 %v390
    %v428 = vpop.f32.mrb[0].mxu0
    %v429 = vadd.f32 0.0, %v428
    %v430 = vpop.f32.mrb[0].mxu0
    %v431 = vpop.f32.mrb[0].mxu0
    %v432 = vpop.f32.mrb[0].mxu0
    %433 = vdwg.mxu0
    %v434 = vadd.f32 %v393, %v429
    %v435 = vxor.u32 %v434, 2147483648
    %v436 = vmul.f32 %v435, 1.442695
    %v437 = vpow.pop %v436
    %v438 = vadd.f32 %v437, 1.0
    %v439 = vrcp.pop %v438
    %v440 = vmul.f32 1.0, %v439
    %v441 = vtanh.pop %v434
    %v442 = vmul.f32 %v440, %v369
    %444 = vrot.lane.b32.xlu0 %v441, 32
    %v445 = vpop.permute.xlu0 %444
    %v447 = vmul.f32 %v440, %v445
    %449 = vrot.lane.b32.xlu0 %v447, 32
    %v450 = vpop.permute.xlu0 %449
    %v452 = vadd.f32 %v442, %v450
    %v453 = vtanh.pop %v452
    %455 = vrot.lane.b32.xlu0 %v453, 32
    %v456 = vpop.permute.xlu0 %455
    %v458 = vmul.f32 %v440, %v456
    %460 = vrot.lane.b32.xlu0 %v458, 64
    %v461 = vpop.permute.xlu0 %460
    %v463 = vsel %vm211, %v461, 0.0
    %464 = vrot.lane.b32.xlu0 %v463, 32
    %v465 = vpop.permute.xlu0 %464
    %v466 = vadd.f32 %v463, %v465
    %467 = vrot.lane.b32.xlu0 %v466, 64
    %v468 = vpop.permute.xlu0 %467
    %v469 = vadd.f32 %v466, %v468
    %470 = vrot.lane.b32.xlu0 %v458, 32
    %v471 = vpop.permute.xlu0 %470
    %vm473 = vcmask 1048320
    %474 = vst.msk [vmem:[#allocation10] sm:$0xff] %vm473, %v471
    %v475 = vmul.f32 %v469, %v82
    %v476 = vpack.c.bf16 %v475, %v475
    %s477 = scalar_lea.vmem [#allocation4], 16
    %v478 = vld [vmem:[%s477] sm:$0xf]
    %v479 = vunpack.c.l.bf16 %v478
    %480 = vmatprep.subr.bf16.mxu0 0
    %481 = vmatpush1.bf16.msra.mxu0 %v122
    %482 = vmatprep.subr.bf16.mxu0 0
    %483 = vmatpush1.bf16.msra.mxu0 %v123
    %484 = vmatprep.subr.bf16.mxu0 0
    %485 = vmatpush1.bf16.msra.mxu0 %v124
    %486 = vmatprep.subr.bf16.mxu0 0
    %487 = vmatpush1.bf16.msra.mxu0 %v125
    %488 = vmatprep.subr.bf16.mxu0 0
    %489 = vmatpush1.bf16.msra.mxu0 %v126
    %490 = vmatprep.subr.bf16.mxu0 0
    %491 = vmatpush1.bf16.msra.mxu0 %v127
    %492 = vmatprep.subr.bf16.mxu0 0
    %493 = vmatpush1.bf16.msra.mxu0 %v128
    %494 = vmatprep.subr.bf16.mxu0 0
    %495 = vmatpush1.bf16.msra.mxu0 %v129
    %496 = vmatprep.subr.bf16.mxu0 0
    %497 = vmatpush1.bf16.msra.mxu0 0
    %498 = vmatprep.subr.bf16.mxu0 0
    %499 = vmatpush1.bf16.msra.mxu0 0
    %500 = vmatprep.subr.bf16.mxu0 0
    %501 = vmatpush1.bf16.msra.mxu0 0
    %502 = vmatprep.subr.bf16.mxu0 0
    %503 = vmatpush1.bf16.msra.mxu0 0
    %504 = vmatprep.subr.bf16.mxu0 0
    %505 = vmatpush1.bf16.msra.mxu0 0
    %506 = vmatprep.subr.bf16.mxu0 0
    %507 = vmatpush1.bf16.msra.mxu0 0
    %508 = vmatprep.subr.bf16.mxu0 0
    %509 = vmatpush1.bf16.msra.mxu0 0
    %510 = vmatprep.subr.bf16.mxu0 0
    %511 = vmatpush1.bf16.msra.mxu0 0
    %512 = vmatprep.mubr.bf16.mxu0 0
    %513 = vmatmul.mubr.bf16.gmra.mrb[0].mxu0 %v476
    %v514 = vpop.f32.mrb[0].mxu0
    %v515 = vadd.f32 0.0, %v514
    %v516 = vpop.f32.mrb[0].mxu0
    %v517 = vpop.f32.mrb[0].mxu0
    %v518 = vpop.f32.mrb[0].mxu0
    %519 = vdwg.mxu0
    %v520 = vadd.f32 %v479, %v515
    %v521 = vxor.u32 %v520, 2147483648
    %v522 = vmul.f32 %v521, 1.442695
    %v523 = vpow.pop %v522
    %v524 = vadd.f32 %v523, 1.0
    %v525 = vrcp.pop %v524
    %v526 = vmul.f32 1.0, %v525
    %v527 = vtanh.pop %v520
    %v528 = vmul.f32 %v526, %v452
    %530 = vrot.lane.b32.xlu0 %v527, 32
    %v531 = vpop.permute.xlu0 %530
    %v533 = vmul.f32 %v526, %v531
    %535 = vrot.lane.b32.xlu0 %v533, 32
    %v536 = vpop.permute.xlu0 %535
    %v538 = vadd.f32 %v528, %v536
    %v539 = vtanh.pop %v538
    %541 = vrot.lane.b32.xlu0 %v539, 32
    %v542 = vpop.permute.xlu0 %541
    %v544 = vmul.f32 %v526, %v542
    %546 = vrot.lane.b32.xlu0 %v544, 64
    %v547 = vpop.permute.xlu0 %546
    %v549 = vsel %vm211, %v547, 0.0
    %550 = vrot.lane.b32.xlu0 %v549, 32
    %v551 = vpop.permute.xlu0 %550
    %v552 = vadd.f32 %v549, %v551
    %553 = vrot.lane.b32.xlu0 %v552, 64
    %v554 = vpop.permute.xlu0 %553
    %v555 = vadd.f32 %v552, %v554
    %556 = vst.msk [vmem:[#allocation10 + $0x8] sm:$0xff] %vm211, %v547
    %v557 = vmul.f32 %v555, %v82
    %v558 = vpack.c.bf16 %v557, %v557
    %s559 = scalar_lea.vmem [#allocation4], 20
    %v560 = vld [vmem:[%s559] sm:$0xf]
    %v561 = vunpack.c.l.bf16 %v560
    %562 = vmatprep.subr.bf16.mxu0 0
    %563 = vmatpush1.bf16.msra.mxu0 %v122
    %564 = vmatprep.subr.bf16.mxu0 0
    %565 = vmatpush1.bf16.msra.mxu0 %v123
    %566 = vmatprep.subr.bf16.mxu0 0
    %567 = vmatpush1.bf16.msra.mxu0 %v124
    %568 = vmatprep.subr.bf16.mxu0 0
    %569 = vmatpush1.bf16.msra.mxu0 %v125
    %570 = vmatprep.subr.bf16.mxu0 0
    %571 = vmatpush1.bf16.msra.mxu0 %v126
    %572 = vmatprep.subr.bf16.mxu0 0
    %573 = vmatpush1.bf16.msra.mxu0 %v127
    %574 = vmatprep.subr.bf16.mxu0 0
    %575 = vmatpush1.bf16.msra.mxu0 %v128
    %576 = vmatprep.subr.bf16.mxu0 0
    %577 = vmatpush1.bf16.msra.mxu0 %v129
    %578 = vmatprep.subr.bf16.mxu0 0
    %579 = vmatpush1.bf16.msra.mxu0 0
    %580 = vmatprep.subr.bf16.mxu0 0
    %581 = vmatpush1.bf16.msra.mxu0 0
    %582 = vmatprep.subr.bf16.mxu0 0
    %583 = vmatpush1.bf16.msra.mxu0 0
    %584 = vmatprep.subr.bf16.mxu0 0
    %585 = vmatpush1.bf16.msra.mxu0 0
    %586 = vmatprep.subr.bf16.mxu0 0
    %587 = vmatpush1.bf16.msra.mxu0 0
    %588 = vmatprep.subr.bf16.mxu0 0
    %589 = vmatpush1.bf16.msra.mxu0 0
    %590 = vmatprep.subr.bf16.mxu0 0
    %591 = vmatpush1.bf16.msra.mxu0 0
    %592 = vmatprep.subr.bf16.mxu0 0
    %593 = vmatpush1.bf16.msra.mxu0 0
    %594 = vmatprep.mubr.bf16.mxu0 0
    %595 = vmatmul.mubr.bf16.gmra.mrb[0].mxu0 %v558
    %v596 = vpop.f32.mrb[0].mxu0
    %v597 = vadd.f32 0.0, %v596
    %v598 = vpop.f32.mrb[0].mxu0
    %v599 = vpop.f32.mrb[0].mxu0
    %v600 = vpop.f32.mrb[0].mxu0
    %601 = vdwg.mxu0
    %v602 = vadd.f32 %v561, %v597
    %v603 = vxor.u32 %v602, 2147483648
    %v604 = vmul.f32 %v603, 1.442695
    %v605 = vpow.pop %v604
    %v606 = vadd.f32 %v605, 1.0
    %v607 = vrcp.pop %v606
    %v608 = vmul.f32 1.0, %v607
    %v609 = vtanh.pop %v602
    %v610 = vmul.f32 %v608, %v538
    %612 = vrot.lane.b32.xlu0 %v609, 32
    %v613 = vpop.permute.xlu0 %612
    %v615 = vmul.f32 %v608, %v613
    %617 = vrot.lane.b32.xlu0 %v615, 32
    %v618 = vpop.permute.xlu0 %617
    %v620 = vadd.f32 %v610, %v618
    %v621 = vtanh.pop %v620
    %623 = vrot.lane.b32.xlu0 %v621, 32
    %v624 = vpop.permute.xlu0 %623
    %v626 = vmul.f32 %v608, %v624
    %628 = vrot.lane.b32.xlu0 %v626, 64
    %v629 = vpop.permute.xlu0 %628
    %v631 = vsel %vm211, %v629, 0.0
    %632 = vrot.lane.b32.xlu0 %v631, 32
    %v633 = vpop.permute.xlu0 %632
    %v634 = vadd.f32 %v631, %v633
    %635 = vrot.lane.b32.xlu0 %v634, 64
    %v636 = vpop.permute.xlu0 %635
    %v637 = vadd.f32 %v634, %v636
    %638 = vrot.lane.b32.xlu0 %v626, 96
    %v639 = vpop.permute.xlu0 %638
    %641 = vst.msk [vmem:[#allocation10 + $0x8] sm:$0xff] %vm304, %v639
    %v642 = vmul.f32 %v637, %v82
    %v643 = vpack.c.bf16 %v642, %v642
    %s644 = scalar_lea.vmem [#allocation4], 24
    %v645 = vld [vmem:[%s644] sm:$0xf]
    %v646 = vunpack.c.l.bf16 %v645
    %647 = vmatprep.subr.bf16.mxu0 0
    %648 = vmatpush1.bf16.msra.mxu0 %v122
    %649 = vmatprep.subr.bf16.mxu0 0
    %650 = vmatpush1.bf16.msra.mxu0 %v123
    %651 = vmatprep.subr.bf16.mxu0 0
    %652 = vmatpush1.bf16.msra.mxu0 %v124
    %653 = vmatprep.subr.bf16.mxu0 0
    %654 = vmatpush1.bf16.msra.mxu0 %v125
    %655 = vmatprep.subr.bf16.mxu0 0
    %656 = vmatpush1.bf16.msra.mxu0 %v126
    %657 = vmatprep.subr.bf16.mxu0 0
    %658 = vmatpush1.bf16.msra.mxu0 %v127
    %659 = vmatprep.subr.bf16.mxu0 0
    %660 = vmatpush1.bf16.msra.mxu0 %v128
    %661 = vmatprep.subr.bf16.mxu0 0
    %662 = vmatpush1.bf16.msra.mxu0 %v129
    %663 = vmatprep.subr.bf16.mxu0 0
    %664 = vmatpush1.bf16.msra.mxu0 0
    %665 = vmatprep.subr.bf16.mxu0 0
    %666 = vmatpush1.bf16.msra.mxu0 0
    %667 = vmatprep.subr.bf16.mxu0 0
    %668 = vmatpush1.bf16.msra.mxu0 0
    %669 = vmatprep.subr.bf16.mxu0 0
    %670 = vmatpush1.bf16.msra.mxu0 0
    %671 = vmatprep.subr.bf16.mxu0 0
    %672 = vmatpush1.bf16.msra.mxu0 0
    %673 = vmatprep.subr.bf16.mxu0 0
    %674 = vmatpush1.bf16.msra.mxu0 0
    %675 = vmatprep.subr.bf16.mxu0 0
    %676 = vmatpush1.bf16.msra.mxu0 0
    %677 = vmatprep.subr.bf16.mxu0 0
    %678 = vmatpush1.bf16.msra.mxu0 0
    %679 = vmatprep.mubr.bf16.mxu0 0
    %680 = vmatmul.mubr.bf16.gmra.mrb[0].mxu0 %v643
    %v681 = vpop.f32.mrb[0].mxu0
    %v682 = vadd.f32 0.0, %v681
    %v683 = vpop.f32.mrb[0].mxu0
    %v684 = vpop.f32.mrb[0].mxu0
    %v685 = vpop.f32.mrb[0].mxu0
    %686 = vdwg.mxu0
    %v687 = vadd.f32 %v646, %v682
    %v688 = vxor.u32 %v687, 2147483648
    %v689 = vmul.f32 %v688, 1.442695
    %v690 = vpow.pop %v689
    %v691 = vadd.f32 %v690, 1.0
    %v692 = vrcp.pop %v691
    %v693 = vmul.f32 1.0, %v692
    %v694 = vtanh.pop %v687
    %v695 = vmul.f32 %v693, %v620
    %697 = vrot.lane.b32.xlu0 %v694, 32
    %v698 = vpop.permute.xlu0 %697
    %v700 = vmul.f32 %v693, %v698
    %702 = vrot.lane.b32.xlu0 %v700, 32
    %v703 = vpop.permute.xlu0 %702
    %v705 = vadd.f32 %v695, %v703
    %v706 = vtanh.pop %v705
    %708 = vrot.lane.b32.xlu0 %v706, 32
    %v709 = vpop.permute.xlu0 %708
    %v711 = vmul.f32 %v693, %v709
    %713 = vrot.lane.b32.xlu0 %v711, 64
    %v714 = vpop.permute.xlu0 %713
    %v716 = vsel %vm211, %v714, 0.0
    %717 = vrot.lane.b32.xlu0 %v716, 32
    %v718 = vpop.permute.xlu0 %717
    %v719 = vadd.f32 %v716, %v718
    %720 = vrot.lane.b32.xlu0 %v719, 64
    %v721 = vpop.permute.xlu0 %720
    %v722 = vadd.f32 %v719, %v721
    %723 = vst.msk [vmem:[#allocation10 + $0x8] sm:$0xff] %vm387, %v711
    %v724 = vmul.f32 %v722, %v82
    %v725 = vpack.c.bf16 %v724, %v724
    %s726 = scalar_lea.vmem [#allocation4], 28
    %v727 = vld [vmem:[%s726] sm:$0xf]
    %v728 = vunpack.c.l.bf16 %v727
    %729 = vmatprep.subr.bf16.mxu0 0
    %730 = vmatpush1.bf16.msra.mxu0 %v122
    %731 = vmatprep.subr.bf16.mxu0 0
    %732 = vmatpush1.bf16.msra.mxu0 %v123
    %733 = vmatprep.subr.bf16.mxu0 0
    %734 = vmatpush1.bf16.msra.mxu0 %v124
    %735 = vmatprep.subr.bf16.mxu0 0
    %736 = vmatpush1.bf16.msra.mxu0 %v125
    %737 = vmatprep.subr.bf16.mxu0 0
    %738 = vmatpush1.bf16.msra.mxu0 %v126
    %739 = vmatprep.subr.bf16.mxu0 0
    %740 = vmatpush1.bf16.msra.mxu0 %v127
    %741 = vmatprep.subr.bf16.mxu0 0
    %742 = vmatpush1.bf16.msra.mxu0 %v128
    %743 = vmatprep.subr.bf16.mxu0 0
    %744 = vmatpush1.bf16.msra.mxu0 %v129
    %745 = vmatprep.subr.bf16.mxu0 0
    %746 = vmatpush1.bf16.msra.mxu0 0
    %747 = vmatprep.subr.bf16.mxu0 0
    %748 = vmatpush1.bf16.msra.mxu0 0
    %749 = vmatprep.subr.bf16.mxu0 0
    %750 = vmatpush1.bf16.msra.mxu0 0
    %751 = vmatprep.subr.bf16.mxu0 0
    %752 = vmatpush1.bf16.msra.mxu0 0
    %753 = vmatprep.subr.bf16.mxu0 0
    %754 = vmatpush1.bf16.msra.mxu0 0
    %755 = vmatprep.subr.bf16.mxu0 0
    %756 = vmatpush1.bf16.msra.mxu0 0
    %757 = vmatprep.subr.bf16.mxu0 0
    %758 = vmatpush1.bf16.msra.mxu0 0
    %759 = vmatprep.subr.bf16.mxu0 0
    %760 = vmatpush1.bf16.msra.mxu0 0
    %761 = vmatprep.mubr.bf16.mxu0 0
    %762 = vmatmul.mubr.bf16.gmra.mrb[0].mxu0 %v725
    %v763 = vpop.f32.mrb[0].mxu0
    %v764 = vadd.f32 0.0, %v763
    %v765 = vpop.f32.mrb[0].mxu0
    %v766 = vpop.f32.mrb[0].mxu0
    %v767 = vpop.f32.mrb[0].mxu0
    %768 = vdwg.mxu0
    %v769 = vadd.f32 %v728, %v764
    %v770 = vxor.u32 %v769, 2147483648
    %v771 = vmul.f32 %v770, 1.442695
    %v772 = vpow.pop %v771
    %v773 = vadd.f32 %v772, 1.0
    %v774 = vrcp.pop %v773
    %v775 = vmul.f32 1.0, %v774
    %v776 = vtanh.pop %v769
    %v777 = vmul.f32 %v775, %v705
    %779 = vrot.lane.b32.xlu0 %v776, 32
    %v780 = vpop.permute.xlu0 %779
    %v782 = vmul.f32 %v775, %v780
    %784 = vrot.lane.b32.xlu0 %v782, 32
    %v785 = vpop.permute.xlu0 %784
    %v787 = vadd.f32 %v777, %v785
    %v788 = vtanh.pop %v787
    %790 = vrot.lane.b32.xlu0 %v788, 32
    %v791 = vpop.permute.xlu0 %790
    %v793 = vmul.f32 %v775, %v791
    %795 = vrot.lane.b32.xlu0 %v793, 64
    %v796 = vpop.permute.xlu0 %795
    %v798 = vsel %vm211, %v796, 0.0
    %799 = vrot.lane.b32.xlu0 %v798, 32
    %v800 = vpop.permute.xlu0 %799
    %v801 = vadd.f32 %v798, %v800
    %802 = vrot.lane.b32.xlu0 %v801, 64
    %v803 = vpop.permute.xlu0 %802
    %v804 = vadd.f32 %v801, %v803
    %805 = vrot.lane.b32.xlu0 %v793, 32
    %v806 = vpop.permute.xlu0 %805
    %808 = vst.msk [vmem:[#allocation10 + $0x8] sm:$0xff] %vm473, %v806
    %v809 = vmul.f32 %v804, %v82
    %v810 = vpack.c.bf16 %v809, %v809
    %s811 = scalar_lea.vmem [#allocation4], 32
    %v812 = vld [vmem:[%s811] sm:$0xf]
    %v813 = vunpack.c.l.bf16 %v812
    %814 = vmatprep.subr.bf16.mxu0 0
    %815 = vmatpush1.bf16.msra.mxu0 %v122
    %816 = vmatprep.subr.bf16.mxu0 0
    %817 = vmatpush1.bf16.msra.mxu0 %v123
    %818 = vmatprep.subr.bf16.mxu0 0
    %819 = vmatpush1.bf16.msra.mxu0 %v124
    %820 = vmatprep.subr.bf16.mxu0 0
    %821 = vmatpush1.bf16.msra.mxu0 %v125
    %822 = vmatprep.subr.bf16.mxu0 0
    %823 = vmatpush1.bf16.msra.mxu0 %v126
    %824 = vmatprep.subr.bf16.mxu0 0
    %825 = vmatpush1.bf16.msra.mxu0 %v127
    %826 = vmatprep.subr.bf16.mxu0 0
    %827 = vmatpush1.bf16.msra.mxu0 %v128
    %828 = vmatprep.subr.bf16.mxu0 0
    %829 = vmatpush1.bf16.msra.mxu0 %v129
    %830 = vmatprep.subr.bf16.mxu0 0
    %831 = vmatpush1.bf16.msra.mxu0 0
    %832 = vmatprep.subr.bf16.mxu0 0
    %833 = vmatpush1.bf16.msra.mxu0 0
    %834 = vmatprep.subr.bf16.mxu0 0
    %835 = vmatpush1.bf16.msra.mxu0 0
    %836 = vmatprep.subr.bf16.mxu0 0
    %837 = vmatpush1.bf16.msra.mxu0 0
    %838 = vmatprep.subr.bf16.mxu0 0
    %839 = vmatpush1.bf16.msra.mxu0 0
    %840 = vmatprep.subr.bf16.mxu0 0
    %841 = vmatpush1.bf16.msra.mxu0 0
    %842 = vmatprep.subr.bf16.mxu0 0
    %843 = vmatpush1.bf16.msra.mxu0 0
    %844 = vmatprep.subr.bf16.mxu0 0
    %845 = vmatpush1.bf16.msra.mxu0 0
    %846 = vmatprep.mubr.bf16.mxu0 0
    %847 = vmatmul.mubr.bf16.gmra.mrb[0].mxu0 %v810
    %v848 = vpop.f32.mrb[0].mxu0
    %v849 = vadd.f32 0.0, %v848
    %v850 = vpop.f32.mrb[0].mxu0
    %v851 = vpop.f32.mrb[0].mxu0
    %v852 = vpop.f32.mrb[0].mxu0
    %853 = vdwg.mxu0
    %v854 = vadd.f32 %v813, %v849
    %v855 = vxor.u32 %v854, 2147483648
    %v856 = vmul.f32 %v855, 1.442695
    %v857 = vpow.pop %v856
    %v858 = vadd.f32 %v857, 1.0
    %v859 = vrcp.pop %v858
    %v860 = vmul.f32 1.0, %v859
    %v861 = vtanh.pop %v854
    %v862 = vmul.f32 %v860, %v787
    %864 = vrot.lane.b32.xlu0 %v861, 32
    %v865 = vpop.permute.xlu0 %864
    %v867 = vmul.f32 %v860, %v865
    %869 = vrot.lane.b32.xlu0 %v867, 32
    %v870 = vpop.permute.xlu0 %869
    %v872 = vadd.f32 %v862, %v870
    %v873 = vtanh.pop %v872
    %875 = vrot.lane.b32.xlu0 %v873, 32
    %v876 = vpop.permute.xlu0 %875
    %v878 = vmul.f32 %v860, %v876
    %880 = vrot.lane.b32.xlu0 %v878, 64
    %v881 = vpop.permute.xlu0 %880
    %v883 = vsel %vm211, %v881, 0.0
    %884 = vrot.lane.b32.xlu0 %v883, 32
    %v885 = vpop.permute.xlu0 %884
    %v886 = vadd.f32 %v883, %v885
    %887 = vrot.lane.b32.xlu0 %v886, 64
    %v888 = vpop.permute.xlu0 %887
    %v889 = vadd.f32 %v886, %v888
    %s890 = scalar_select %p83, 1, 0
    %v891 = vstv %s890
    %vm892 = vcmp.eq.s32.totalorder %v891, 1
    %v893 = vsel %vm892, %v872, %v787
    %v894 = vsel %vm892, %v889, %v804
    %895 = vst.msk [vmem:[#allocation10 + $0x10] sm:$0xff] %vm211, %v881
    %v896 = vmul.f32 %v894, %v82
    %v897 = vpack.c.bf16 %v896, %v896
    %s898 = scalar_lea.vmem [#allocation4], 36
    %v899 = vld [vmem:[%s898] sm:$0xf]
    %v900 = vunpack.c.l.bf16 %v899
    %901 = vmatprep.subr.bf16.mxu0 0
    %902 = vmatpush1.bf16.msra.mxu0 %v122
    %903 = vmatprep.subr.bf16.mxu0 0
    %904 = vmatpush1.bf16.msra.mxu0 %v123
    %905 = vmatprep.subr.bf16.mxu0 0
    %906 = vmatpush1.bf16.msra.mxu0 %v124
    %907 = vmatprep.subr.bf16.mxu0 0
    %908 = vmatpush1.bf16.msra.mxu0 %v125
    %909 = vmatprep.subr.bf16.mxu0 0
    %910 = vmatpush1.bf16.msra.mxu0 %v126
    %911 = vmatprep.subr.bf16.mxu0 0
    %912 = vmatpush1.bf16.msra.mxu0 %v127
    %913 = vmatprep.subr.bf16.mxu0 0
    %914 = vmatpush1.bf16.msra.mxu0 %v128
    %915 = vmatprep.subr.bf16.mxu0 0
    %916 = vmatpush1.bf16.msra.mxu0 %v129
    %917 = vmatprep.subr.bf16.mxu0 0
    %918 = vmatpush1.bf16.msra.mxu0 0
    %919 = vmatprep.subr.bf16.mxu0 0
    %920 = vmatpush1.bf16.msra.mxu0 0
    %921 = vmatprep.subr.bf16.mxu0 0
    %922 = vmatpush1.bf16.msra.mxu0 0
    %923 = vmatprep.subr.bf16.mxu0 0
    %924 = vmatpush1.bf16.msra.mxu0 0
    %925 = vmatprep.subr.bf16.mxu0 0
    %926 = vmatpush1.bf16.msra.mxu0 0
    %927 = vmatprep.subr.bf16.mxu0 0
    %928 = vmatpush1.bf16.msra.mxu0 0
    %929 = vmatprep.subr.bf16.mxu0 0
    %930 = vmatpush1.bf16.msra.mxu0 0
    %931 = vmatprep.subr.bf16.mxu0 0
    %932 = vmatpush1.bf16.msra.mxu0 0
    %933 = vmatprep.mubr.bf16.mxu0 0
    %934 = vmatmul.mubr.bf16.gmra.mrb[0].mxu0 %v897
    %v935 = vpop.f32.mrb[0].mxu0
    %v936 = vadd.f32 0.0, %v935
    %v937 = vpop.f32.mrb[0].mxu0
    %v938 = vpop.f32.mrb[0].mxu0
    %v939 = vpop.f32.mrb[0].mxu0
    %940 = vdwg.mxu0
    %v941 = vadd.f32 %v900, %v936
    %v942 = vxor.u32 %v941, 2147483648
    %v943 = vmul.f32 %v942, 1.442695
    %v944 = vpow.pop %v943
    %v945 = vadd.f32 %v944, 1.0
    %v946 = vrcp.pop %v945
    %v947 = vmul.f32 1.0, %v946
    %v948 = vtanh.pop %v941
    %v949 = vmul.f32 %v947, %v893
    %951 = vrot.lane.b32.xlu0 %v948, 32
    %v952 = vpop.permute.xlu0 %951
    %v954 = vmul.f32 %v947, %v952
    %956 = vrot.lane.b32.xlu0 %v954, 32
    %v957 = vpop.permute.xlu0 %956
    %v959 = vadd.f32 %v949, %v957
    %v960 = vtanh.pop %v959
    %962 = vrot.lane.b32.xlu0 %v960, 32
    %v963 = vpop.permute.xlu0 %962
    %v965 = vmul.f32 %v947, %v963
    %967 = vrot.lane.b32.xlu0 %v965, 64
    %v968 = vpop.permute.xlu0 %967
    %v970 = vsel %vm211, %v968, 0.0
    %971 = vrot.lane.b32.xlu0 %v970, 32
    %v972 = vpop.permute.xlu0 %971
    %v973 = vadd.f32 %v970, %v972
    %974 = vrot.lane.b32.xlu0 %v973, 64
    %v975 = vpop.permute.xlu0 %974
    %v976 = vadd.f32 %v973, %v975
    %v977 = vsel %vm892, %v959, %v787
    %v978 = vsel %vm892, %v976, %v804
    %979 = vrot.lane.b32.xlu0 %v965, 96
    %v980 = vpop.permute.xlu0 %979
    %982 = vst.msk [vmem:[#allocation10 + $0x10] sm:$0xff] %vm304, %v980
    %v983 = vmul.f32 %v978, %v82
    %v984 = vpack.c.bf16 %v983, %v983
    %s985 = scalar_lea.vmem [#allocation4], 40
    %v986 = vld [vmem:[%s985] sm:$0xf]
    %v987 = vunpack.c.l.bf16 %v986
    %988 = vmatprep.subr.bf16.mxu0 0
    %989 = vmatpush1.bf16.msra.mxu0 %v122
    %990 = vmatprep.subr.bf16.mxu0 0
    %991 = vmatpush1.bf16.msra.mxu0 %v123
    %992 = vmatprep.subr.bf16.mxu0 0
    %993 = vmatpush1.bf16.msra.mxu0 %v124
    %994 = vmatprep.subr.bf16.mxu0 0
    %995 = vmatpush1.bf16.msra.mxu0 %v125
    %996 = vmatprep.subr.bf16.mxu0 0
    %997 = vmatpush1.bf16.msra.mxu0 %v126
    %998 = vmatprep.subr.bf16.mxu0 0
    %999 = vmatpush1.bf16.msra.mxu0 %v127
    %1000 = vmatprep.subr.bf16.mxu0 0
    %1001 = vmatpush1.bf16.msra.mxu0 %v128
    %1002 = vmatprep.subr.bf16.mxu0 0
    %1003 = vmatpush1.bf16.msra.mxu0 %v129
    %1004 = vmatprep.subr.bf16.mxu0 0
    %1005 = vmatpush1.bf16.msra.mxu0 0
    %1006 = vmatprep.subr.bf16.mxu0 0
    %1007 = vmatpush1.bf16.msra.mxu0 0
    %1008 = vmatprep.subr.bf16.mxu0 0
    %1009 = vmatpush1.bf16.msra.mxu0 0
    %1010 = vmatprep.subr.bf16.mxu0 0
    %1011 = vmatpush1.bf16.msra.mxu0 0
    %1012 = vmatprep.subr.bf16.mxu0 0
    %1013 = vmatpush1.bf16.msra.mxu0 0
    %1014 = vmatprep.subr.bf16.mxu0 0
    %1015 = vmatpush1.bf16.msra.mxu0 0
    %1016 = vmatprep.subr.bf16.mxu0 0
    %1017 = vmatpush1.bf16.msra.mxu0 0
    %1018 = vmatprep.subr.bf16.mxu0 0
    %1019 = vmatpush1.bf16.msra.mxu0 0
    %1020 = vmatprep.mubr.bf16.mxu0 0
    %1021 = vmatmul.mubr.bf16.gmra.mrb[0].mxu0 %v984
    %v1022 = vpop.f32.mrb[0].mxu0
    %v1023 = vadd.f32 0.0, %v1022
    %v1024 = vpop.f32.mrb[0].mxu0
    %v1025 = vpop.f32.mrb[0].mxu0
    %v1026 = vpop.f32.mrb[0].mxu0
    %1027 = vdwg.mxu0
    %v1028 = vadd.f32 %v987, %v1023
    %v1029 = vxor.u32 %v1028, 2147483648
    %v1030 = vmul.f32 %v1029, 1.442695
    %v1031 = vpow.pop %v1030
    %v1032 = vadd.f32 %v1031, 1.0
    %v1033 = vrcp.pop %v1032
    %v1034 = vmul.f32 1.0, %v1033
    %v1035 = vtanh.pop %v1028
    %v1036 = vmul.f32 %v1034, %v977
    %1038 = vrot.lane.b32.xlu0 %v1035, 32
    %v1039 = vpop.permute.xlu0 %1038
    %v1041 = vmul.f32 %v1034, %v1039
    %1043 = vrot.lane.b32.xlu0 %v1041, 32
    %v1044 = vpop.permute.xlu0 %1043
    %v1046 = vadd.f32 %v1036, %v1044
    %v1047 = vtanh.pop %v1046
    %1049 = vrot.lane.b32.xlu0 %v1047, 32
    %v1050 = vpop.permute.xlu0 %1049
    %v1052 = vmul.f32 %v1034, %v1050
    %1054 = vrot.lane.b32.xlu0 %v1052, 64
    %v1055 = vpop.permute.xlu0 %1054
    %v1057 = vsel %vm211, %v1055, 0.0
    %1058 = vrot.lane.b32.xlu0 %v1057, 32
    %v1059 = vpop.permute.xlu0 %1058
    %v1060 = vadd.f32 %v1057, %v1059
    %1061 = vrot.lane.b32.xlu0 %v1060, 64
    %v1062 = vpop.permute.xlu0 %1061
    %v1063 = vadd.f32 %v1060, %v1062
    %v1064 = vsel %vm892, %v1046, %v787
    %v1065 = vsel %vm892, %v1063, %v804
    %1066 = vst.msk [vmem:[#allocation10 + $0x10] sm:$0xff] %vm387, %v1052
    %v1067 = vmul.f32 %v1065, %v82
    %v1068 = vpack.c.bf16 %v1067, %v1067
    %s1069 = scalar_lea.vmem [#allocation4], 44
    %v1070 = vld [vmem:[%s1069] sm:$0xf]
    %v1071 = vunpack.c.l.bf16 %v1070
    %1072 = vmatprep.subr.bf16.mxu0 0
    %1073 = vmatpush1.bf16.msra.mxu0 %v122
    %1074 = vmatprep.subr.bf16.mxu0 0
    %1075 = vmatpush1.bf16.msra.mxu0 %v123
    %1076 = vmatprep.subr.bf16.mxu0 0
    %1077 = vmatpush1.bf16.msra.mxu0 %v124
    %1078 = vmatprep.subr.bf16.mxu0 0
    %1079 = vmatpush1.bf16.msra.mxu0 %v125
    %1080 = vmatprep.subr.bf16.mxu0 0
    %1081 = vmatpush1.bf16.msra.mxu0 %v126
    %1082 = vmatprep.subr.bf16.mxu0 0
    %1083 = vmatpush1.bf16.msra.mxu0 %v127
    %1084 = vmatprep.subr.bf16.mxu0 0
    %1085 = vmatpush1.bf16.msra.mxu0 %v128
    %1086 = vmatprep.subr.bf16.mxu0 0
    %1087 = vmatpush1.bf16.msra.mxu0 %v129
    %1088 = vmatprep.subr.bf16.mxu0 0
    %1089 = vmatpush1.bf16.msra.mxu0 0
    %1090 = vmatprep.subr.bf16.mxu0 0
    %1091 = vmatpush1.bf16.msra.mxu0 0
    %1092 = vmatprep.subr.bf16.mxu0 0
    %1093 = vmatpush1.bf16.msra.mxu0 0
    %1094 = vmatprep.subr.bf16.mxu0 0
    %1095 = vmatpush1.bf16.msra.mxu0 0
    %1096 = vmatprep.subr.bf16.mxu0 0
    %1097 = vmatpush1.bf16.msra.mxu0 0
    %1098 = vmatprep.subr.bf16.mxu0 0
    %1099 = vmatpush1.bf16.msra.mxu0 0
    %1100 = vmatprep.subr.bf16.mxu0 0
    %1101 = vmatpush1.bf16.msra.mxu0 0
    %1102 = vmatprep.subr.bf16.mxu0 0
    %1103 = vmatpush1.bf16.msra.mxu0 0
    %1104 = vmatprep.mubr.bf16.mxu0 0
    %1105 = vmatmul.mubr.bf16.gmra.mrb[0].mxu0 %v1068
    %v1106 = vpop.f32.mrb[0].mxu0
    %v1107 = vadd.f32 0.0, %v1106
    %v1108 = vpop.f32.mrb[0].mxu0
    %v1109 = vpop.f32.mrb[0].mxu0
    %v1110 = vpop.f32.mrb[0].mxu0
    %1111 = vdwg.mxu0
    %v1112 = vadd.f32 %v1071, %v1107
    %v1113 = vxor.u32 %v1112, 2147483648
    %v1114 = vmul.f32 %v1113, 1.442695
    %v1115 = vpow.pop %v1114
    %v1116 = vadd.f32 %v1115, 1.0
    %v1117 = vrcp.pop %v1116
    %v1118 = vmul.f32 1.0, %v1117
    %v1119 = vtanh.pop %v1112
    %v1120 = vmul.f32 %v1118, %v1064
    %1122 = vrot.lane.b32.xlu0 %v1119, 32
    %v1123 = vpop.permute.xlu0 %1122
    %v1125 = vmul.f32 %v1118, %v1123
    %1127 = vrot.lane.b32.xlu0 %v1125, 32
    %v1128 = vpop.permute.xlu0 %1127
    %v1130 = vadd.f32 %v1120, %v1128
    %v1131 = vtanh.pop %v1130
    %1133 = vrot.lane.b32.xlu0 %v1131, 32
    %v1134 = vpop.permute.xlu0 %1133
    %v1136 = vmul.f32 %v1118, %v1134
    %1138 = vrot.lane.b32.xlu0 %v1136, 64
    %v1139 = vpop.permute.xlu0 %1138
    %v1141 = vsel %vm211, %v1139, 0.0
    %1142 = vrot.lane.b32.xlu0 %v1141, 32
    %v1143 = vpop.permute.xlu0 %1142
    %v1144 = vadd.f32 %v1141, %v1143
    %1145 = vrot.lane.b32.xlu0 %v1144, 64
    %v1146 = vpop.permute.xlu0 %1145
    %v1147 = vadd.f32 %v1144, %v1146
    %v1148 = vsel %vm892, %v1130, %v787
    %v1149 = vsel %vm892, %v1147, %v804
    %1150 = vrot.lane.b32.xlu0 %v1136, 32
    %v1151 = vpop.permute.xlu0 %1150
    %1153 = vst.msk [vmem:[#allocation10 + $0x10] sm:$0xff] %vm473, %v1151
    %v1154 = vmul.f32 %v1149, %v82
    %v1155 = vpack.c.bf16 %v1154, %v1154
    %s1156 = scalar_lea.vmem [#allocation4], 48
    %v1157 = vld [vmem:[%s1156] sm:$0xf]
    %v1158 = vunpack.c.l.bf16 %v1157
    %1159 = vmatprep.subr.bf16.mxu0 0
    %1160 = vmatpush1.bf16.msra.mxu0 %v122
    %1161 = vmatprep.subr.bf16.mxu0 0
    %1162 = vmatpush1.bf16.msra.mxu0 %v123
    %1163 = vmatprep.subr.bf16.mxu0 0
    %1164 = vmatpush1.bf16.msra.mxu0 %v124
    %1165 = vmatprep.subr.bf16.mxu0 0
    %1166 = vmatpush1.bf16.msra.mxu0 %v125
    %1167 = vmatprep.subr.bf16.mxu0 0
    %1168 = vmatpush1.bf16.msra.mxu0 %v126
    %1169 = vmatprep.subr.bf16.mxu0 0
    %1170 = vmatpush1.bf16.msra.mxu0 %v127
    %1171 = vmatprep.subr.bf16.mxu0 0
    %1172 = vmatpush1.bf16.msra.mxu0 %v128
    %1173 = vmatprep.subr.bf16.mxu0 0
    %1174 = vmatpush1.bf16.msra.mxu0 %v129
    %1175 = vmatprep.subr.bf16.mxu0 0
    %1176 = vmatpush1.bf16.msra.mxu0 0
    %1177 = vmatprep.subr.bf16.mxu0 0
    %1178 = vmatpush1.bf16.msra.mxu0 0
    %1179 = vmatprep.subr.bf16.mxu0 0
    %1180 = vmatpush1.bf16.msra.mxu0 0
    %1181 = vmatprep.subr.bf16.mxu0 0
    %1182 = vmatpush1.bf16.msra.mxu0 0
    %1183 = vmatprep.subr.bf16.mxu0 0
    %1184 = vmatpush1.bf16.msra.mxu0 0
    %1185 = vmatprep.subr.bf16.mxu0 0
    %1186 = vmatpush1.bf16.msra.mxu0 0
    %1187 = vmatprep.subr.bf16.mxu0 0
    %1188 = vmatpush1.bf16.msra.mxu0 0
    %1189 = vmatprep.subr.bf16.mxu0 0
    %1190 = vmatpush1.bf16.msra.mxu0 0
    %1191 = vmatprep.mubr.bf16.mxu0 0
    %1192 = vmatmul.mubr.bf16.gmra.mrb[0].mxu0 %v1155
    %v1193 = vpop.f32.mrb[0].mxu0
    %v1194 = vadd.f32 0.0, %v1193
    %v1195 = vpop.f32.mrb[0].mxu0
    %v1196 = vpop.f32.mrb[0].mxu0
    %v1197 = vpop.f32.mrb[0].mxu0
    %1198 = vdwg.mxu0
    %v1199 = vadd.f32 %v1158, %v1194
    %v1200 = vxor.u32 %v1199, 2147483648
    %v1201 = vmul.f32 %v1200, 1.442695
    %v1202 = vpow.pop %v1201
    %v1203 = vadd.f32 %v1202, 1.0
    %v1204 = vrcp.pop %v1203
    %v1205 = vmul.f32 1.0, %v1204
    %v1206 = vtanh.pop %v1199
    %v1207 = vmul.f32 %v1205, %v1148
    %1209 = vrot.lane.b32.xlu0 %v1206, 32
    %v1210 = vpop.permute.xlu0 %1209
    %v1212 = vmul.f32 %v1205, %v1210
    %1214 = vrot.lane.b32.xlu0 %v1212, 32
    %v1215 = vpop.permute.xlu0 %1214
    %v1217 = vadd.f32 %v1207, %v1215
    %v1218 = vtanh.pop %v1217
    %1220 = vrot.lane.b32.xlu0 %v1218, 32
    %v1221 = vpop.permute.xlu0 %1220
    %v1223 = vmul.f32 %v1205, %v1221
    %1225 = vrot.lane.b32.xlu0 %v1223, 64
    %v1226 = vpop.permute.xlu0 %1225
    %v1228 = vsel %vm211, %v1226, 0.0
    %1229 = vrot.lane.b32.xlu0 %v1228, 32
    %v1230 = vpop.permute.xlu0 %1229
    %v1231 = vadd.f32 %v1228, %v1230
    %1232 = vrot.lane.b32.xlu0 %v1231, 64
    %v1233 = vpop.permute.xlu0 %1232
    %v1234 = vadd.f32 %v1231, %v1233
    %v1235 = vsel %vm892, %v1217, %v787
    %v1236 = vsel %vm892, %v1234, %v804
    %1237 = vst.msk [vmem:[#allocation10 + $0x18] sm:$0xff] %vm211, %v1226
    %v1238 = vmul.f32 %v1236, %v82
    %v1239 = vpack.c.bf16 %v1238, %v1238
    %s1240 = scalar_lea.vmem [#allocation4], 52
    %v1241 = vld [vmem:[%s1240] sm:$0xf]
    %v1242 = vunpack.c.l.bf16 %v1241
    %1243 = vmatprep.subr.bf16.mxu0 0
    %1244 = vmatpush1.bf16.msra.mxu0 %v122
    %1245 = vmatprep.subr.bf16.mxu0 0
    %1246 = vmatpush1.bf16.msra.mxu0 %v123
    %1247 = vmatprep.subr.bf16.mxu0 0
    %1248 = vmatpush1.bf16.msra.mxu0 %v124
    %1249 = vmatprep.subr.bf16.mxu0 0
    %1250 = vmatpush1.bf16.msra.mxu0 %v125
    %1251 = vmatprep.subr.bf16.mxu0 0
    %1252 = vmatpush1.bf16.msra.mxu0 %v126
    %1253 = vmatprep.subr.bf16.mxu0 0
    %1254 = vmatpush1.bf16.msra.mxu0 %v127
    %1255 = vmatprep.subr.bf16.mxu0 0
    %1256 = vmatpush1.bf16.msra.mxu0 %v128
    %1257 = vmatprep.subr.bf16.mxu0 0
    %1258 = vmatpush1.bf16.msra.mxu0 %v129
    %1259 = vmatprep.subr.bf16.mxu0 0
    %1260 = vmatpush1.bf16.msra.mxu0 0
    %1261 = vmatprep.subr.bf16.mxu0 0
    %1262 = vmatpush1.bf16.msra.mxu0 0
    %1263 = vmatprep.subr.bf16.mxu0 0
    %1264 = vmatpush1.bf16.msra.mxu0 0
    %1265 = vmatprep.subr.bf16.mxu0 0
    %1266 = vmatpush1.bf16.msra.mxu0 0
    %1267 = vmatprep.subr.bf16.mxu0 0
    %1268 = vmatpush1.bf16.msra.mxu0 0
    %1269 = vmatprep.subr.bf16.mxu0 0
    %1270 = vmatpush1.bf16.msra.mxu0 0
    %1271 = vmatprep.subr.bf16.mxu0 0
    %1272 = vmatpush1.bf16.msra.mxu0 0
    %1273 = vmatprep.subr.bf16.mxu0 0
    %1274 = vmatpush1.bf16.msra.mxu0 0
    %1275 = vmatprep.mubr.bf16.mxu0 0
    %1276 = vmatmul.mubr.bf16.gmra.mrb[0].mxu0 %v1239
    %v1277 = vpop.f32.mrb[0].mxu0
    %v1278 = vadd.f32 0.0, %v1277
    %v1279 = vpop.f32.mrb[0].mxu0
    %v1280 = vpop.f32.mrb[0].mxu0
    %v1281 = vpop.f32.mrb[0].mxu0
    %1282 = vdwg.mxu0
    %v1283 = vadd.f32 %v1242, %v1278
    %v1284 = vxor.u32 %v1283, 2147483648
    %v1285 = vmul.f32 %v1284, 1.442695
    %v1286 = vpow.pop %v1285
    %v1287 = vadd.f32 %v1286, 1.0
    %v1288 = vrcp.pop %v1287
    %v1289 = vmul.f32 1.0, %v1288
    %v1290 = vtanh.pop %v1283
    %v1291 = vmul.f32 %v1289, %v1235
    %1293 = vrot.lane.b32.xlu0 %v1290, 32
    %v1294 = vpop.permute.xlu0 %1293
    %v1296 = vmul.f32 %v1289, %v1294
    %1298 = vrot.lane.b32.xlu0 %v1296, 32
    %v1299 = vpop.permute.xlu0 %1298
    %v1301 = vadd.f32 %v1291, %v1299
    %v1302 = vtanh.pop %v1301
    %1304 = vrot.lane.b32.xlu0 %v1302, 32
    %v1305 = vpop.permute.xlu0 %1304
    %v1307 = vmul.f32 %v1289, %v1305
    %1309 = vrot.lane.b32.xlu0 %v1307, 64
    %v1310 = vpop.permute.xlu0 %1309
    %v1312 = vsel %vm211, %v1310, 0.0
    %1313 = vrot.lane.b32.xlu0 %v1312, 32
    %v1314 = vpop.permute.xlu0 %1313
    %v1315 = vadd.f32 %v1312, %v1314
    %1316 = vrot.lane.b32.xlu0 %v1315, 64
    %v1317 = vpop.permute.xlu0 %1316
    %v1318 = vadd.f32 %v1315, %v1317
    %v1319 = vsel %vm892, %v1301, %v787
    %v1320 = vsel %vm892, %v1318, %v804
    %1321 = vrot.lane.b32.xlu0 %v1307, 96
    %v1322 = vpop.permute.xlu0 %1321
    %1324 = vst.msk [vmem:[#allocation10 + $0x18] sm:$0xff] %vm304, %v1322
    %v1325 = vmul.f32 %v1320, %v82
    %v1326 = vpack.c.bf16 %v1325, %v1325
    %s1327 = scalar_lea.vmem [#allocation4], 56
    %v1328 = vld [vmem:[%s1327] sm:$0xf]
    %v1329 = vunpack.c.l.bf16 %v1328
    %1330 = vmatprep.subr.bf16.mxu0 0
    %1331 = vmatpush1.bf16.msra.mxu0 %v122
    %1332 = vmatprep.subr.bf16.mxu0 0
    %1333 = vmatpush1.bf16.msra.mxu0 %v123
    %1334 = vmatprep.subr.bf16.mxu0 0
    %1335 = vmatpush1.bf16.msra.mxu0 %v124
    %1336 = vmatprep.subr.bf16.mxu0 0
    %1337 = vmatpush1.bf16.msra.mxu0 %v125
    %1338 = vmatprep.subr.bf16.mxu0 0
    %1339 = vmatpush1.bf16.msra.mxu0 %v126
    %1340 = vmatprep.subr.bf16.mxu0 0
    %1341 = vmatpush1.bf16.msra.mxu0 %v127
    %1342 = vmatprep.subr.bf16.mxu0 0
    %1343 = vmatpush1.bf16.msra.mxu0 %v128
    %1344 = vmatprep.subr.bf16.mxu0 0
    %1345 = vmatpush1.bf16.msra.mxu0 %v129
    %1346 = vmatprep.subr.bf16.mxu0 0
    %1347 = vmatpush1.bf16.msra.mxu0 0
    %1348 = vmatprep.subr.bf16.mxu0 0
    %1349 = vmatpush1.bf16.msra.mxu0 0
    %1350 = vmatprep.subr.bf16.mxu0 0
    %1351 = vmatpush1.bf16.msra.mxu0 0
    %1352 = vmatprep.subr.bf16.mxu0 0
    %1353 = vmatpush1.bf16.msra.mxu0 0
    %1354 = vmatprep.subr.bf16.mxu0 0
    %1355 = vmatpush1.bf16.msra.mxu0 0
    %1356 = vmatprep.subr.bf16.mxu0 0
    %1357 = vmatpush1.bf16.msra.mxu0 0
    %1358 = vmatprep.subr.bf16.mxu0 0
    %1359 = vmatpush1.bf16.msra.mxu0 0
    %1360 = vmatprep.subr.bf16.mxu0 0
    %1361 = vmatpush1.bf16.msra.mxu0 0
    %1362 = vmatprep.mubr.bf16.mxu0 0
    %1363 = vmatmul.mubr.bf16.gmra.mrb[0].mxu0 %v1326
    %v1364 = vpop.f32.mrb[0].mxu0
    %v1365 = vadd.f32 0.0, %v1364
    %v1366 = vpop.f32.mrb[0].mxu0
    %v1367 = vpop.f32.mrb[0].mxu0
    %v1368 = vpop.f32.mrb[0].mxu0
    %1369 = vdwg.mxu0
    %v1370 = vadd.f32 %v1329, %v1365
    %v1371 = vxor.u32 %v1370, 2147483648
    %v1372 = vmul.f32 %v1371, 1.442695
    %v1373 = vpow.pop %v1372
    %v1374 = vadd.f32 %v1373, 1.0
    %v1375 = vrcp.pop %v1374
    %v1376 = vmul.f32 1.0, %v1375
    %v1377 = vtanh.pop %v1370
    %v1378 = vmul.f32 %v1376, %v1319
    %1380 = vrot.lane.b32.xlu0 %v1377, 32
    %v1381 = vpop.permute.xlu0 %1380
    %v1383 = vmul.f32 %v1376, %v1381
    %1385 = vrot.lane.b32.xlu0 %v1383, 32
    %v1386 = vpop.permute.xlu0 %1385
    %v1388 = vadd.f32 %v1378, %v1386
    %v1389 = vtanh.pop %v1388
    %1391 = vrot.lane.b32.xlu0 %v1389, 32
    %v1392 = vpop.permute.xlu0 %1391
    %v1394 = vmul.f32 %v1376, %v1392
    %1396 = vrot.lane.b32.xlu0 %v1394, 64
    %v1397 = vpop.permute.xlu0 %1396
    %v1399 = vsel %vm211, %v1397, 0.0
    %1400 = vrot.lane.b32.xlu0 %v1399, 32
    %v1401 = vpop.permute.xlu0 %1400
    %v1402 = vadd.f32 %v1399, %v1401
    %1403 = vrot.lane.b32.xlu0 %v1402, 64
    %v1404 = vpop.permute.xlu0 %1403
    %v1405 = vadd.f32 %v1402, %v1404
    %v1406 = vsel %vm892, %v1388, %v787
    %v1407 = vsel %vm892, %v1405, %v804
    %1408 = vst.msk [vmem:[#allocation10 + $0x18] sm:$0xff] %vm387, %v1394
    %v1409 = vmul.f32 %v1407, %v82
    %v1410 = vpack.c.bf16 %v1409, %v1409
    %s1411 = scalar_lea.vmem [#allocation4], 60
    %v1412 = vld [vmem:[%s1411] sm:$0xf]
    %v1413 = vunpack.c.l.bf16 %v1412
    %1414 = vmatprep.subr.bf16.mxu0 0
    %1415 = vmatpush1.bf16.msra.mxu0 %v122
    %1416 = vmatprep.subr.bf16.mxu0 0
    %1417 = vmatpush1.bf16.msra.mxu0 %v123
    %1418 = vmatprep.subr.bf16.mxu0 0
    %1419 = vmatpush1.bf16.msra.mxu0 %v124
    %1420 = vmatprep.subr.bf16.mxu0 0
    %1421 = vmatpush1.bf16.msra.mxu0 %v125
    %1422 = vmatprep.subr.bf16.mxu0 0
    %1423 = vmatpush1.bf16.msra.mxu0 %v126
    %1424 = vmatprep.subr.bf16.mxu0 0
    %1425 = vmatpush1.bf16.msra.mxu0 %v127
    %1426 = vmatprep.subr.bf16.mxu0 0
    %1427 = vmatpush1.bf16.msra.mxu0 %v128
    %1428 = vmatprep.subr.bf16.mxu0 0
    %1429 = vmatpush1.bf16.msra.mxu0 %v129
    %1430 = vmatprep.subr.bf16.mxu0 0
    %1431 = vmatpush1.bf16.msra.mxu0 0
    %1432 = vmatprep.subr.bf16.mxu0 0
    %1433 = vmatpush1.bf16.msra.mxu0 0
    %1434 = vmatprep.subr.bf16.mxu0 0
    %1435 = vmatpush1.bf16.msra.mxu0 0
    %1436 = vmatprep.subr.bf16.mxu0 0
    %1437 = vmatpush1.bf16.msra.mxu0 0
    %1438 = vmatprep.subr.bf16.mxu0 0
    %1439 = vmatpush1.bf16.msra.mxu0 0
    %1440 = vmatprep.subr.bf16.mxu0 0
    %1441 = vmatpush1.bf16.msra.mxu0 0
    %1442 = vmatprep.subr.bf16.mxu0 0
    %1443 = vmatpush1.bf16.msra.mxu0 0
    %1444 = vmatprep.subr.bf16.mxu0 0
    %1445 = vmatpush1.bf16.msra.mxu0 0
    %1446 = vmatprep.mubr.bf16.mxu0 0
    %1447 = vmatmul.mubr.bf16.gmra.mrb[0].mxu0 %v1410
    %v1448 = vpop.f32.mrb[0].mxu0
    %v1449 = vadd.f32 0.0, %v1448
    %v1450 = vpop.f32.mrb[0].mxu0
    %v1451 = vpop.f32.mrb[0].mxu0
    %v1452 = vpop.f32.mrb[0].mxu0
    %1453 = vdwg.mxu0
    %v1454 = vadd.f32 %v1413, %v1449
    %v1455 = vxor.u32 %v1454, 2147483648
    %v1456 = vmul.f32 %v1455, 1.442695
    %v1457 = vpow.pop %v1456
    %v1458 = vadd.f32 %v1457, 1.0
    %v1459 = vrcp.pop %v1458
    %v1460 = vmul.f32 1.0, %v1459
    %v1461 = vtanh.pop %v1454
    %v1462 = vmul.f32 %v1460, %v1406
    %1464 = vrot.lane.b32.xlu0 %v1461, 32
    %v1465 = vpop.permute.xlu0 %1464
    %v1467 = vmul.f32 %v1460, %v1465
    %1469 = vrot.lane.b32.xlu0 %v1467, 32
    %v1470 = vpop.permute.xlu0 %1469
    %v1472 = vadd.f32 %v1462, %v1470
    %v1473 = vtanh.pop %v1472
    %1475 = vrot.lane.b32.xlu0 %v1473, 32
    %v1476 = vpop.permute.xlu0 %1475
    %v1478 = vmul.f32 %v1460, %v1476
    %1480 = vrot.lane.b32.xlu0 %v1478, 64
    %v1481 = vpop.permute.xlu0 %1480
    %v1483 = vsel %vm211, %v1481, 0.0
    %1484 = vrot.lane.b32.xlu0 %v1483, 32
    %v1485 = vpop.permute.xlu0 %1484
    %v1486 = vadd.f32 %v1483, %v1485
    %1487 = vrot.lane.b32.xlu0 %v1486, 64
    %v1488 = vpop.permute.xlu0 %1487
    %v1489 = vadd.f32 %v1486, %v1488
    %v1490 = vsel %vm892, %v1472, %v787
    %v1491 = vsel %vm892, %v1489, %v804
    %1492 = vrot.lane.b32.xlu0 %v1478, 32
    %v1493 = vpop.permute.xlu0 %1492
    %1495 = vst.msk [vmem:[#allocation10 + $0x18] sm:$0xff] %vm473, %v1493
    %1496 = vst [vmem:[#allocation2] sm:$0xff] %v1491
    %1498 = vrot.lane.b32.xlu0 %v1490, 96
    %v1499 = vpop.permute.xlu0 %1498
    %1501 = vst.msk [vmem:[#allocation3] sm:$0xff] %vm211, %v1499
    // Predicated region
    $region30: #{tpu_custom_call.1} parent=1 // pred_check
      %p1502 = pneg %p59
    $region31: #{tpu_custom_call.1} parent=1 // pred_check_branch
      %1504 = sbr.rel (%p1502) target = $region33
    $region32: #{tpu_custom_call.1} parent=1 // pred_region
      %1505 = vst.msk [vmem:[#allocation11] sm:$0xff] %vm211, %v1491
      %1506 = vst.msk [vmem:[#allocation13] sm:$0xff] %vm211, %v1499
    $region33: #{tpu_custom_call.1} parent=1 // pred_fallthru
      _
    // Predicated region
    $region34: #{tpu_custom_call.1} parent=1 // pred_check
      _
    $region35: #{tpu_custom_call.1} parent=1 // pred_check_branch
      %1508 = sbr.rel (0) target = $region37
    $region36: #{tpu_custom_call.1} parent=1 // pred_region
      %s1510 = ssub.s32 512, 512
      %1511 = vsyncadd [#allocation6], %s1510
      %s1513 = sshll.u32 [#allocation10], 4
      %s1514 = int_to_ptr.vmem [resolvable:$true] %s1513
      %1516 = dma.vmem_to_hbm [thread:$0]  %s1514, 512, %s3, [#allocation6]
    $region37: #{tpu_custom_call.1} parent=1 // pred_fallthru
      _
    // Predicated region
    $region38: #{tpu_custom_call.1} parent=1 // pred_check
      _
    $region39: #{tpu_custom_call.1} parent=1 // pred_check_branch
      %1518 = sbr.rel (0) target = $region41
    $region40: #{tpu_custom_call.1} parent=1 // pred_region
      %s1520 = ssub.s32 128, 128
      %1521 = vsyncadd [#allocation12], %s1520
      %s1523 = sshll.u32 [#allocation11], 4
      %s1524 = int_to_ptr.vmem [resolvable:$true] %s1523
      %1526 = dma.vmem_to_hbm [thread:$0]  %s1524, 128, %s4, [#allocation12]
    $region41: #{tpu_custom_call.1} parent=1 // pred_fallthru
      _
    // Predicated region
    $region42: #{tpu_custom_call.1} parent=1 // pred_check
      _
    $region43: #{tpu_custom_call.1} parent=1 // pred_check_branch
      %1528 = sbr.rel (0) target = $region45
    $region44: #{tpu_custom_call.1} parent=1 // pred_region
      %s1530 = ssub.s32 128, 128
      %1531 = vsyncadd [#allocation12], %s1530
      %s1533 = sshll.u32 [#allocation13], 4
      %s1534 = int_to_ptr.vmem [resolvable:$true] %s1533
      %1536 = dma.vmem_to_hbm [thread:$0]  %s1534, 128, %s5, [#allocation12]
    $region45: #{tpu_custom_call.1} parent=1 // pred_fallthru
      _
    // Predicated region
    $region46: #{tpu_custom_call.1} parent=1 // pred_check
      _
    $region47: #{tpu_custom_call.1} parent=1 // pred_check_branch
      %1538 = sbr.rel (0) target = $region49
    $region48: #{tpu_custom_call.1} parent=1 // pred_region
      %1539 = dma.done [#allocation6], 512
    $region49: #{tpu_custom_call.1} parent=1 // pred_fallthru
      _
    // Predicated region
    $region50: #{tpu_custom_call.1} parent=1 // pred_check
      _
    $region51: #{tpu_custom_call.1} parent=1 // pred_check_branch
      %1541 = sbr.rel (0) target = $region53
    $region52: #{tpu_custom_call.1} parent=1 // pred_region
      %1542 = dma.done [#allocation12], 128
    $region53: #{tpu_custom_call.1} parent=1 // pred_fallthru
      _
    // Predicated region
    $region54: #{tpu_custom_call.1} parent=1 // pred_check
      _
    $region55: #{tpu_custom_call.1} parent=1 // pred_check_branch
      %1544 = sbr.rel (0) target = $region57
    $region56: #{tpu_custom_call.1} parent=1 // pred_region
      %1545 = dma.done [#allocation12], 128
    $region57: #{tpu_custom_call.1} parent=1 // pred_fallthru
      _
    %1546 = vsyncpa [#allocation5], 1
    %1547 = vsyncpa [#allocation8], 1
    %1548 = vsyncpa [#allocation6], 1
    %1549 = vsyncpa [#allocation12], 1

</llo_original>
